<compile_context>
chip_gen: v7x
topology: tpu7x:2x2x1
jax: 0.10.0
libtpu: 0.0.40
codegen_flags: <defaults>
</compile_context>

<pallas_src>
import functools

import jax
import jax.numpy as jnp
from jax.experimental import pallas as pl
from jax.experimental.pallas import tpu as pltpu


def _attention_decoder_kernel(a_ref, s0_ref, w1a_t_ref, ws_ref, b1_ref,
                              w2_ref, b2_ref, wx_t_ref, bg_ref, out_ref,
                              *, word_output, midp):
    _, T, AF = a_ref.shape                         # block is one batch row: (1, T, AF)
    OF = s0_ref.shape[-1]

    a2 = a_ref[0]                                  # (T, AF)   bf16

    # ---- hoisted, decode-step-invariant projections of the annotations `a` ----------
    #   ha  = a @ W1a^T + b1                (attention input-path)
    #   aWx = a @ Wx^T                      (LSTM input-path pushed through the attention
    #                                        sum:  ctx @ Wx^T = sum_t alpha_t (a_t @ Wx^T))
    ha = jnp.dot(a2, w1a_t_ref[...],
                 preferred_element_type=jnp.float32) + b1_ref[...]   # (T, MIDP)  f32
    aWx = jnp.dot(a2, wx_t_ref[...],
                  preferred_element_type=jnp.float32)                # (T, 4*OF)  f32

    w2_row = w2_ref[...]                           # (1, MIDP)  f32
    b2 = b2_ref[...]                               # (1, 1)     f32
    bg = bg_ref[...]                               # (1, 4*OF)  f32

    s = s0_ref[0].astype(jnp.float32)              # (1, OF)
    c = jnp.zeros((1, OF), jnp.float32)

    outs = []
    # TODO(synk): for large word_output switch to lax.fori_loop(..., unroll=True) with
    # per-step stores out_ref[..., pl.ds(k*OF, OF)] to bound vreg live ranges.
    for _ in range(word_output):
        # --- one fused s-dependent MXU dot per step: [s@W1s^T | s@Wh^T] --------------
        zs = jnp.dot(s.astype(jnp.bfloat16), ws_ref[...],
                     preferred_element_type=jnp.float32)             # (1, MIDP+4*OF)
        hs = zs[:, :midp]                                            # (1, MIDP)
        zh = zs[:, midp:]                                            # (1, 4*OF)

        # --- Context_generator attention (elementwise kept f32: v5e-safe) ------------
        h = jnp.tanh(ha + hs)                                        # (T, MIDP)
        scores = jnp.sum(h * w2_row, axis=-1, keepdims=True) + b2    # (T, 1)
        scores = jnp.maximum(scores, 0.0)                            # ReLU
        m = jnp.max(scores, axis=0, keepdims=True)
        e = jnp.exp(scores - m)
        alphas = e / jnp.sum(e, axis=0, keepdims=True)               # softmax over T

        # --- LSTM_single cell (x = context), context folded into hoisted aWx ---------
        zx = jnp.sum(alphas * aWx, axis=0, keepdims=True)            # (1, 4*OF)
        z = zh + zx + bg                                             # (1, 4*OF), [c,u,f,o]
        cand = jnp.tanh(z[:, 0 * OF:1 * OF])
        g_u = jax.nn.sigmoid(z[:, 1 * OF:2 * OF])
        g_f = jax.nn.sigmoid(z[:, 2 * OF:3 * OF])
        g_o = jax.nn.sigmoid(z[:, 3 * OF:4 * OF])
        c = g_u * cand + g_f * c
        s = g_o * jnp.tanh(c)
        outs.append(s)

    # single lane-dense store: (1, 1, word_output*OF); wrapper reshapes to (B, W, OF).
    out_ref[...] = jnp.concatenate(outs, axis=-1).reshape(out_ref.shape)


def attention_decoder_pallas(a, s_prev, params, word_output):
    B, T, AF = a.shape
    OF = s_prev.shape[-1]
    MID = params["W1"].shape[0]
    MIDP = ((MID + 127) // 128) * 128       # pad MID (1000 -> 1024): dense lane tiles

    # ---- glue: split / transpose / zero-pad weights so the kernel sees 2-D operands ----
    W1 = params["W1"].astype(jnp.float32)                    # (MID, AF + OF), cols = [a | s]
    w1a_t = jnp.zeros((AF, MIDP), jnp.float32).at[:, :MID].set(W1[:, :AF].T)
    w1s_t = jnp.zeros((OF, MIDP), jnp.float32).at[:, :MID].set(W1[:, AF:].T)
    b1_row = jnp.zeros((1, MIDP), jnp.float32).at[:, :MID].set(
        params["b1"].reshape(1, MID).astype(jnp.float32))
    w2_row = jnp.zeros((1, MIDP), jnp.float32).at[:, :MID].set(
        params["W2"].reshape(1, MID).astype(jnp.float32))
    b2_11 = params["b2"].reshape(1, 1).astype(jnp.float32)

    gate_w = ("w_c", "w_u", "w_f", "w_o")   # torch weights (OF, OF+AF), cols = [hidden | x]
    gate_b = ("b_c", "b_u", "b_f", "b_o")
    wh_t = jnp.concatenate([params[k][:, :OF] for k in gate_w], axis=0).T   # (OF, 4*OF)
    wx_t = jnp.concatenate([params[k][:, OF:] for k in gate_w], axis=0).T   # (AF, 4*OF)
    bg = jnp.concatenate([params[k] for k in gate_b], axis=1)               # (1, 4*OF)
    bg = bg.astype(jnp.float32)

    # fused s-dependent weight: one dot per step computes [s@W1s^T | s@Wh^T].
    ws_fused = jnp.concatenate([w1s_t, wh_t.astype(jnp.float32)], axis=1)   # (OF, MIDP+4*OF)

    # bf16 only at the MXU operand level (f32 accumulation; elementwise path stays f32).
    a_bf = a.astype(jnp.bfloat16)
    w1a_t_bf = w1a_t.astype(jnp.bfloat16)
    ws_bf = ws_fused.astype(jnp.bfloat16)
    wx_t_bf = wx_t.astype(jnp.bfloat16)

    s_prev3 = s_prev.astype(jnp.float32).reshape(B, 1, OF)

    kernel = functools.partial(_attention_decoder_kernel,
                               word_output=word_output, midp=MIDP)

    grid_spec = pltpu.PrefetchScalarGridSpec(
        num_scalar_prefetch=0,
        grid=(B,),                                                # batch rows independent
        in_specs=[
            pl.BlockSpec((1, T, AF), lambda b: (b, 0, 0)),        # a       (bf16, per row)
            pl.BlockSpec((1, 1, OF), lambda b: (b, 0, 0)),        # s_prev  (per row)
            pl.BlockSpec((AF, MIDP), lambda b: (0, 0)),           # W1a^T   (bf16, shared)
            pl.BlockSpec((OF, MIDP + 4 * OF), lambda b: (0, 0)),  # [W1s^T | Wh^T] (bf16)
            pl.BlockSpec((1, MIDP), lambda b: (0, 0)),            # b1
            pl.BlockSpec((1, MIDP), lambda b: (0, 0)),            # W2 row
            pl.BlockSpec((1, 1), lambda b: (0, 0)),               # b2
            pl.BlockSpec((AF, 4 * OF), lambda b: (0, 0)),         # Wx^T    (bf16)
            pl.BlockSpec((1, 4 * OF), lambda b: (0, 0)),          # gate biases
        ],
        out_specs=pl.BlockSpec((1, 1, word_output * OF), lambda b: (b, 0, 0)),
    )

    out3 = pl.pallas_call(
        kernel,
        out_shape=jax.ShapeDtypeStruct((B, 1, word_output * OF), jnp.float32),
        grid_spec=grid_spec,
        compiler_params=pltpu.CompilerParams(
            dimension_semantics=("parallel",)),   # v7x: shard batch rows across the 2 TCs
    )(a_bf, s_prev3, w1a_t_bf, ws_bf, b1_row, w2_row, b2_11, wx_t_bf, bg)

    # (B, 1, word_output*OF) lane-dense slab -> (B, word_output, OF) PyTorch layout.
    return out3.reshape(B, word_output, OF)


# -------------------- pure-JAX reference (mirrors the PyTorch forward) --------------------
def attention_decoder_reference(a, s_prev, params, word_output):
    B, T, AF = a.shape
    OF = s_prev.shape[-1]
    s = s_prev
    c = jnp.zeros((B, OF), jnp.float32)
    outs = []
    for _ in range(word_output):
        s_exp = jnp.broadcast_to(s[:, None, :], (B, T, OF))
        concat = jnp.concatenate([a, s_exp], axis=-1)                       # (B, T, AF+OF)
        h = jnp.tanh(concat @ params["W1"].T + params["b1"])                # (B, T, MID)
        sc = jnp.maximum(h @ params["W2"].T + params["b2"], 0.0)            # (B, T, 1)
        al = jax.nn.softmax(sc, axis=1)
        ctx = jnp.sum(al * a, axis=1)                                       # (B, AF)
        xa = jnp.concatenate([s, ctx], axis=1)                              # (B, OF+AF)
        cand = jnp.tanh(xa @ params["w_c"].T + params["b_c"])
        g_u = jax.nn.sigmoid(xa @ params["w_u"].T + params["b_u"])
        g_f = jax.nn.sigmoid(xa @ params["w_f"].T + params["b_f"])
        g_o = jax.nn.sigmoid(xa @ params["w_o"].T + params["b_o"])
        c = g_u * cand + g_f * c
        s = g_o * jnp.tanh(c)
        outs.append(s)
    return jnp.stack(outs, axis=1)                                          # (B, W, OF)


def _xavier(key, shape):
    fan_out, fan_in = shape
    limit = (6.0 / (fan_in + fan_out)) ** 0.5
    return jax.random.uniform(key, shape, jnp.float32, -limit, limit)


def make_params(key, a_features, output_features, middle=1000):
    AF, OF, MID = a_features, output_features, middle
    ks = jax.random.split(key, 14)
    return {
        # Context_generator
        "W1": _xavier(ks[0], (MID, AF + OF)),
        "b1": jax.random.uniform(ks[1], (MID,), jnp.float32, -0.05, 0.05),
        "W2": _xavier(ks[2], (1, MID)),
        "b2": jax.random.uniform(ks[3], (1,), jnp.float32, -0.05, 0.05),
        # LSTM_single (weights are (OF, OF+AF): columns [hidden | input])
        "w_c": _xavier(ks[4], (OF, OF + AF)),
        "w_u": _xavier(ks[5], (OF, OF + AF)),
        "w_f": _xavier(ks[6], (OF, OF + AF)),
        "w_o": _xavier(ks[7], (OF, OF + AF)),
        "b_c": _xavier(ks[8], (1, OF)),
        "b_u": _xavier(ks[9], (1, OF)),
        "b_f": _xavier(ks[10], (1, OF)),
        "b_o": _xavier(ks[11], (1, OF)),
    }


if __name__ == "__main__":
    B, T = 2, 8                 # batch, number of annotation vectors in `a`
    A_FEAT = 32                 # a_features
    OUT_FEAT = 32               # output_features
    WORD_OUT = 4                # word_output (decode steps)

    key = jax.random.PRNGKey(0)
    k_a, k_s, k_p = jax.random.split(key, 3)
    a = jax.random.normal(k_a, (B, T, A_FEAT), jnp.float32)
    s_prev = jax.random.normal(k_s, (B, OUT_FEAT), jnp.float32)
    params = make_params(k_p, A_FEAT, OUT_FEAT)

    out_pallas = jax.block_until_ready(
        attention_decoder_pallas(a, s_prev, params, WORD_OUT))
    out_ref = jax.block_until_ready(
        attention_decoder_reference(a, s_prev, params, WORD_OUT))

    assert out_pallas.shape == (B, WORD_OUT, OUT_FEAT), out_pallas.shape
    # Tolerance loosened vs. the all-f32 version: MXU operands are bf16 (f32 accumulation),
    # which bounds per-element error well below 5e-2 through the saturating nonlinearities.
    max_err = float(jnp.max(jnp.abs(out_pallas - out_ref)))
    assert max_err < 5e-2, f"max abs error {max_err}"
    print("KERNEL_OK")
</pallas_src>

<mosaic_0001>
module attributes {stable_mosaic.version = 11 : i64} {
  func.func @_attention_decoder_kernel(%arg0: i32, %arg1: memref<1x8x32xbf16, #tpu.memory_space<vmem>>, %arg2: memref<1x1x32xf32, #tpu.memory_space<vmem>>, %arg3: memref<32x1024xbf16, #tpu.memory_space<vmem>>, %arg4: memref<32x1152xbf16, #tpu.memory_space<vmem>>, %arg5: memref<1x1024xf32, #tpu.memory_space<vmem>>, %arg6: memref<1x1024xf32, #tpu.memory_space<vmem>>, %arg7: memref<1x1xf32, #tpu.memory_space<vmem>>, %arg8: memref<32x128xbf16, #tpu.memory_space<vmem>>, %arg9: memref<1x128xf32, #tpu.memory_space<vmem>>, %arg10: memref<1x1x128xf32, #tpu.memory_space<vmem>>) attributes {dimension_semantics = [#tpu.dimension_semantics<parallel>], iteration_bounds = array<i64: 2>, scalar_prefetch = 0 : i64, scratch_operands = 0 : i64, tpu.core_type = #tpu.core_type<tc>, window_params = [{transform_indices = @transform_0, window_bounds = array<i64: 1, 8, 32>}, {transform_indices = @transform_1, window_bounds = array<i64: 1, 1, 32>}, {pipeline_mode = #tpu.pipeline_mode<synchronous>, transform_indices = @transform_2, window_bounds = array<i64: 32, 1024>}, {pipeline_mode = #tpu.pipeline_mode<synchronous>, transform_indices = @transform_3, window_bounds = array<i64: 32, 1152>}, {pipeline_mode = #tpu.pipeline_mode<synchronous>, transform_indices = @transform_4, window_bounds = array<i64: 1, 1024>}, {pipeline_mode = #tpu.pipeline_mode<synchronous>, transform_indices = @transform_5, window_bounds = array<i64: 1, 1024>}, {pipeline_mode = #tpu.pipeline_mode<synchronous>, transform_indices = @transform_6, window_bounds = array<i64: 1, 1>}, {pipeline_mode = #tpu.pipeline_mode<synchronous>, transform_indices = @transform_7, window_bounds = array<i64: 32, 128>}, {pipeline_mode = #tpu.pipeline_mode<synchronous>, transform_indices = @transform_8, window_bounds = array<i64: 1, 128>}, {transform_indices = @transform_9, window_bounds = array<i64: 1, 1, 128>}]} {
    %c0 = arith.constant 0 : index
    %c0_0 = arith.constant 0 : index
    %c0_1 = arith.constant 0 : index
    %0 = vector.load %arg1[%c0, %c0_0, %c0_1] : memref<1x8x32xbf16, #tpu.memory_space<vmem>>, vector<1x8x32xbf16>
    %1 = vector.shape_cast %0 : vector<1x8x32xbf16> to vector<8x32xbf16>
    %c0_2 = arith.constant 0 : index
    %c0_3 = arith.constant 0 : index
    %2 = vector.load %arg3[%c0_2, %c0_3] : memref<32x1024xbf16, #tpu.memory_space<vmem>>, vector<32x1024xbf16>
    %cst = arith.constant dense<0.000000e+00> : vector<8x1024xf32>
    %3 = tpu.matmul %1, %2, %cst {dimension_numbers = #tpu.dot_dimension_numbers<[1], [0], [0], [1], [0, 0, 1, 1], [], []>} : vector<8x32xbf16>, vector<32x1024xbf16>, vector<8x1024xf32> -> vector<8x1024xf32>
    %c0_4 = arith.constant 0 : index
    %c0_5 = arith.constant 0 : index
    %4 = vector.load %arg5[%c0_4, %c0_5] : memref<1x1024xf32, #tpu.memory_space<vmem>>, vector<1x1024xf32>
    %5 = vector.broadcast %4 : vector<1x1024xf32> to vector<8x1024xf32>
    %6 = arith.addf %3, %5 : vector<8x1024xf32>
    %c0_6 = arith.constant 0 : index
    %c0_7 = arith.constant 0 : index
    %7 = vector.load %arg8[%c0_6, %c0_7] : memref<32x128xbf16, #tpu.memory_space<vmem>>, vector<32x128xbf16>
    %cst_8 = arith.constant dense<0.000000e+00> : vector<8x128xf32>
    %8 = tpu.matmul %1, %7, %cst_8 {dimension_numbers = #tpu.dot_dimension_numbers<[1], [0], [0], [1], [0, 0, 1, 1], [], []>} : vector<8x32xbf16>, vector<32x128xbf16>, vector<8x128xf32> -> vector<8x128xf32>
    %c0_9 = arith.constant 0 : index
    %c0_10 = arith.constant 0 : index
    %9 = vector.load %arg6[%c0_9, %c0_10] : memref<1x1024xf32, #tpu.memory_space<vmem>>, vector<1x1024xf32>
    %c0_11 = arith.constant 0 : index
    %c0_12 = arith.constant 0 : index
    %10 = vector.load %arg7[%c0_11, %c0_12] : memref<1x1xf32, #tpu.memory_space<vmem>>, vector<1x1xf32>
    %c0_13 = arith.constant 0 : index
    %c0_14 = arith.constant 0 : index
    %11 = vector.load %arg9[%c0_13, %c0_14] : memref<1x128xf32, #tpu.memory_space<vmem>>, vector<1x128xf32>
    %c0_15 = arith.constant 0 : index
    %c0_16 = arith.constant 0 : index
    %c0_17 = arith.constant 0 : index
    %12 = vector.load %arg2[%c0_15, %c0_16, %c0_17] : memref<1x1x32xf32, #tpu.memory_space<vmem>>, vector<1x1x32xf32>
    %13 = vector.shape_cast %12 : vector<1x1x32xf32> to vector<1x32xf32>
    %cst_18 = arith.constant 0.000000e+00 : f32
    %14 = vector.broadcast %cst_18 : f32 to vector<1x32xf32>
    %15 = arith.truncf %13 : vector<1x32xf32> to vector<1x32xbf16>
    %c0_19 = arith.constant 0 : index
    %c0_20 = arith.constant 0 : index
    %16 = vector.load %arg4[%c0_19, %c0_20] : memref<32x1152xbf16, #tpu.memory_space<vmem>>, vector<32x1152xbf16>
    %cst_21 = arith.constant dense<0.000000e+00> : vector<1x1152xf32>
    %17 = tpu.matmul %15, %16, %cst_21 {dimension_numbers = #tpu.dot_dimension_numbers<[1], [0], [0], [1], [0, 0, 1, 1], [], []>} : vector<1x32xbf16>, vector<32x1152xbf16>, vector<1x1152xf32> -> vector<1x1152xf32>
    %18 = vector.extract_strided_slice %17 {offsets = [0, 0], sizes = [1, 1024], strides = [1, 1]} : vector<1x1152xf32> to vector<1x1024xf32>
    %19 = vector.extract_strided_slice %17 {offsets = [0, 1024], sizes = [1, 128], strides = [1, 1]} : vector<1x1152xf32> to vector<1x128xf32>
    %20 = vector.broadcast %18 : vector<1x1024xf32> to vector<8x1024xf32>
    %21 = arith.addf %6, %20 : vector<8x1024xf32>
    %22 = math.tanh %21 : vector<8x1024xf32>
    %23 = vector.broadcast %9 : vector<1x1024xf32> to vector<8x1024xf32>
    %24 = arith.mulf %22, %23 : vector<8x1024xf32>
    %cst_22 = arith.constant dense<0.000000e+00> : vector<8xf32>
    %25 = vector.multi_reduction <add>, %24, %cst_22 [1] : vector<8x1024xf32> to vector<8xf32>
    %26 = vector.shape_cast %25 : vector<8xf32> to vector<8x1xf32>
    %27 = vector.broadcast %10 : vector<1x1xf32> to vector<8x1xf32>
    %28 = arith.addf %26, %27 : vector<8x1xf32>
    %cst_23 = arith.constant 0.000000e+00 : f32
    %29 = vector.broadcast %cst_23 : f32 to vector<8x1xf32>
    %30 = arith.maximumf %28, %29 : vector<8x1xf32>
    %cst_24 = arith.constant dense<0xFF800000> : vector<1xf32>
    %31 = vector.multi_reduction <maximumf>, %30, %cst_24 [0] : vector<8x1xf32> to vector<1xf32>
    %32 = vector.shape_cast %31 : vector<1xf32> to vector<1x1xf32>
    %33 = vector.broadcast %32 : vector<1x1xf32> to vector<8x1xf32>
    %34 = arith.subf %30, %33 : vector<8x1xf32>
    %35 = math.exp %34 : vector<8x1xf32>
    %cst_25 = arith.constant dense<0.000000e+00> : vector<1xf32>
    %36 = vector.multi_reduction <add>, %35, %cst_25 [0] : vector<8x1xf32> to vector<1xf32>
    %37 = vector.shape_cast %36 : vector<1xf32> to vector<1x1xf32>
    %38 = vector.broadcast %37 : vector<1x1xf32> to vector<8x1xf32>
    %39 = arith.divf %35, %38 : vector<8x1xf32>
    %40 = vector.broadcast %39 : vector<8x1xf32> to vector<8x128xf32>
    %41 = arith.mulf %40, %8 : vector<8x128xf32>
    %cst_26 = arith.constant dense<0.000000e+00> : vector<128xf32>
    %42 = vector.multi_reduction <add>, %41, %cst_26 [0] : vector<8x128xf32> to vector<128xf32>
    %43 = vector.shape_cast %42 : vector<128xf32> to vector<1x128xf32>
    %44 = arith.addf %19, %43 : vector<1x128xf32>
    %45 = arith.addf %44, %11 : vector<1x128xf32>
    %46 = vector.extract_strided_slice %45 {offsets = [0, 0], sizes = [1, 32], strides = [1, 1]} : vector<1x128xf32> to vector<1x32xf32>
    %47 = math.tanh %46 : vector<1x32xf32>
    %48 = vector.extract_strided_slice %45 {offsets = [0, 32], sizes = [1, 32], strides = [1, 1]} : vector<1x128xf32> to vector<1x32xf32>
    %49 = arith.negf %48 : vector<1x32xf32>
    %50 = math.exp %49 : vector<1x32xf32>
    %cst_27 = arith.constant 1.000000e+00 : f32
    %51 = vector.broadcast %cst_27 : f32 to vector<1x32xf32>
    %52 = arith.addf %51, %50 : vector<1x32xf32>
    %53 = arith.divf %51, %52 : vector<1x32xf32>
    %54 = vector.extract_strided_slice %45 {offsets = [0, 64], sizes = [1, 32], strides = [1, 1]} : vector<1x128xf32> to vector<1x32xf32>
    %55 = arith.negf %54 : vector<1x32xf32>
    %56 = math.exp %55 : vector<1x32xf32>
    %cst_28 = arith.constant 1.000000e+00 : f32
    %57 = vector.broadcast %cst_28 : f32 to vector<1x32xf32>
    %58 = arith.addf %57, %56 : vector<1x32xf32>
    %59 = arith.divf %57, %58 : vector<1x32xf32>
    %60 = vector.extract_strided_slice %45 {offsets = [0, 96], sizes = [1, 32], strides = [1, 1]} : vector<1x128xf32> to vector<1x32xf32>
    %61 = arith.negf %60 : vector<1x32xf32>
    %62 = math.exp %61 : vector<1x32xf32>
    %cst_29 = arith.constant 1.000000e+00 : f32
    %63 = vector.broadcast %cst_29 : f32 to vector<1x32xf32>
    %64 = arith.addf %63, %62 : vector<1x32xf32>
    %65 = arith.divf %63, %64 : vector<1x32xf32>
    %66 = arith.mulf %53, %47 : vector<1x32xf32>
    %67 = arith.mulf %59, %14 : vector<1x32xf32>
    %68 = arith.addf %66, %67 : vector<1x32xf32>
    %69 = math.tanh %68 : vector<1x32xf32>
    %70 = arith.mulf %65, %69 : vector<1x32xf32>
    %71 = arith.truncf %70 : vector<1x32xf32> to vector<1x32xbf16>
    %c0_30 = arith.constant 0 : index
    %c0_31 = arith.constant 0 : index
    %72 = vector.load %arg4[%c0_30, %c0_31] : memref<32x1152xbf16, #tpu.memory_space<vmem>>, vector<32x1152xbf16>
    %cst_32 = arith.constant dense<0.000000e+00> : vector<1x1152xf32>
    %73 = tpu.matmul %71, %72, %cst_32 {dimension_numbers = #tpu.dot_dimension_numbers<[1], [0], [0], [1], [0, 0, 1, 1], [], []>} : vector<1x32xbf16>, vector<32x1152xbf16>, vector<1x1152xf32> -> vector<1x1152xf32>
    %74 = vector.extract_strided_slice %73 {offsets = [0, 0], sizes = [1, 1024], strides = [1, 1]} : vector<1x1152xf32> to vector<1x1024xf32>
    %75 = vector.extract_strided_slice %73 {offsets = [0, 1024], sizes = [1, 128], strides = [1, 1]} : vector<1x1152xf32> to vector<1x128xf32>
    %76 = vector.broadcast %74 : vector<1x1024xf32> to vector<8x1024xf32>
    %77 = arith.addf %6, %76 : vector<8x1024xf32>
    %78 = math.tanh %77 : vector<8x1024xf32>
    %79 = vector.broadcast %9 : vector<1x1024xf32> to vector<8x1024xf32>
    %80 = arith.mulf %78, %79 : vector<8x1024xf32>
    %cst_33 = arith.constant dense<0.000000e+00> : vector<8xf32>
    %81 = vector.multi_reduction <add>, %80, %cst_33 [1] : vector<8x1024xf32> to vector<8xf32>
    %82 = vector.shape_cast %81 : vector<8xf32> to vector<8x1xf32>
    %83 = vector.broadcast %10 : vector<1x1xf32> to vector<8x1xf32>
    %84 = arith.addf %82, %83 : vector<8x1xf32>
    %cst_34 = arith.constant 0.000000e+00 : f32
    %85 = vector.broadcast %cst_34 : f32 to vector<8x1xf32>
    %86 = arith.maximumf %84, %85 : vector<8x1xf32>
    %cst_35 = arith.constant dense<0xFF800000> : vector<1xf32>
    %87 = vector.multi_reduction <maximumf>, %86, %cst_35 [0] : vector<8x1xf32> to vector<1xf32>
    %88 = vector.shape_cast %87 : vector<1xf32> to vector<1x1xf32>
    %89 = vector.broadcast %88 : vector<1x1xf32> to vector<8x1xf32>
    %90 = arith.subf %86, %89 : vector<8x1xf32>
    %91 = math.exp %90 : vector<8x1xf32>
    %cst_36 = arith.constant dense<0.000000e+00> : vector<1xf32>
    %92 = vector.multi_reduction <add>, %91, %cst_36 [0] : vector<8x1xf32> to vector<1xf32>
    %93 = vector.shape_cast %92 : vector<1xf32> to vector<1x1xf32>
    %94 = vector.broadcast %93 : vector<1x1xf32> to vector<8x1xf32>
    %95 = arith.divf %91, %94 : vector<8x1xf32>
    %96 = vector.broadcast %95 : vector<8x1xf32> to vector<8x128xf32>
    %97 = arith.mulf %96, %8 : vector<8x128xf32>
    %cst_37 = arith.constant dense<0.000000e+00> : vector<128xf32>
    %98 = vector.multi_reduction <add>, %97, %cst_37 [0] : vector<8x128xf32> to vector<128xf32>
    %99 = vector.shape_cast %98 : vector<128xf32> to vector<1x128xf32>
    %100 = arith.addf %75, %99 : vector<1x128xf32>
    %101 = arith.addf %100, %11 : vector<1x128xf32>
    %102 = vector.extract_strided_slice %101 {offsets = [0, 0], sizes = [1, 32], strides = [1, 1]} : vector<1x128xf32> to vector<1x32xf32>
    %103 = math.tanh %102 : vector<1x32xf32>
    %104 = vector.extract_strided_slice %101 {offsets = [0, 32], sizes = [1, 32], strides = [1, 1]} : vector<1x128xf32> to vector<1x32xf32>
    %105 = arith.negf %104 : vector<1x32xf32>
    %106 = math.exp %105 : vector<1x32xf32>
    %cst_38 = arith.constant 1.000000e+00 : f32
    %107 = vector.broadcast %cst_38 : f32 to vector<1x32xf32>
    %108 = arith.addf %107, %106 : vector<1x32xf32>
    %109 = arith.divf %107, %108 : vector<1x32xf32>
    %110 = vector.extract_strided_slice %101 {offsets = [0, 64], sizes = [1, 32], strides = [1, 1]} : vector<1x128xf32> to vector<1x32xf32>
    %111 = arith.negf %110 : vector<1x32xf32>
    %112 = math.exp %111 : vector<1x32xf32>
    %cst_39 = arith.constant 1.000000e+00 : f32
    %113 = vector.broadcast %cst_39 : f32 to vector<1x32xf32>
    %114 = arith.addf %113, %112 : vector<1x32xf32>
    %115 = arith.divf %113, %114 : vector<1x32xf32>
    %116 = vector.extract_strided_slice %101 {offsets = [0, 96], sizes = [1, 32], strides = [1, 1]} : vector<1x128xf32> to vector<1x32xf32>
    %117 = arith.negf %116 : vector<1x32xf32>
    %118 = math.exp %117 : vector<1x32xf32>
    %cst_40 = arith.constant 1.000000e+00 : f32
    %119 = vector.broadcast %cst_40 : f32 to vector<1x32xf32>
    %120 = arith.addf %119, %118 : vector<1x32xf32>
    %121 = arith.divf %119, %120 : vector<1x32xf32>
    %122 = arith.mulf %109, %103 : vector<1x32xf32>
    %123 = arith.mulf %115, %68 : vector<1x32xf32>
    %124 = arith.addf %122, %123 : vector<1x32xf32>
    %125 = math.tanh %124 : vector<1x32xf32>
    %126 = arith.mulf %121, %125 : vector<1x32xf32>
    %127 = arith.truncf %126 : vector<1x32xf32> to vector<1x32xbf16>
    %c0_41 = arith.constant 0 : index
    %c0_42 = arith.constant 0 : index
    %128 = vector.load %arg4[%c0_41, %c0_42] : memref<32x1152xbf16, #tpu.memory_space<vmem>>, vector<32x1152xbf16>
    %cst_43 = arith.constant dense<0.000000e+00> : vector<1x1152xf32>
    %129 = tpu.matmul %127, %128, %cst_43 {dimension_numbers = #tpu.dot_dimension_numbers<[1], [0], [0], [1], [0, 0, 1, 1], [], []>} : vector<1x32xbf16>, vector<32x1152xbf16>, vector<1x1152xf32> -> vector<1x1152xf32>
    %130 = vector.extract_strided_slice %129 {offsets = [0, 0], sizes = [1, 1024], strides = [1, 1]} : vector<1x1152xf32> to vector<1x1024xf32>
    %131 = vector.extract_strided_slice %129 {offsets = [0, 1024], sizes = [1, 128], strides = [1, 1]} : vector<1x1152xf32> to vector<1x128xf32>
    %132 = vector.broadcast %130 : vector<1x1024xf32> to vector<8x1024xf32>
    %133 = arith.addf %6, %132 : vector<8x1024xf32>
    %134 = math.tanh %133 : vector<8x1024xf32>
    %135 = vector.broadcast %9 : vector<1x1024xf32> to vector<8x1024xf32>
    %136 = arith.mulf %134, %135 : vector<8x1024xf32>
    %cst_44 = arith.constant dense<0.000000e+00> : vector<8xf32>
    %137 = vector.multi_reduction <add>, %136, %cst_44 [1] : vector<8x1024xf32> to vector<8xf32>
    %138 = vector.shape_cast %137 : vector<8xf32> to vector<8x1xf32>
    %139 = vector.broadcast %10 : vector<1x1xf32> to vector<8x1xf32>
    %140 = arith.addf %138, %139 : vector<8x1xf32>
    %cst_45 = arith.constant 0.000000e+00 : f32
    %141 = vector.broadcast %cst_45 : f32 to vector<8x1xf32>
    %142 = arith.maximumf %140, %141 : vector<8x1xf32>
    %cst_46 = arith.constant dense<0xFF800000> : vector<1xf32>
    %143 = vector.multi_reduction <maximumf>, %142, %cst_46 [0] : vector<8x1xf32> to vector<1xf32>
    %144 = vector.shape_cast %143 : vector<1xf32> to vector<1x1xf32>
    %145 = vector.broadcast %144 : vector<1x1xf32> to vector<8x1xf32>
    %146 = arith.subf %142, %145 : vector<8x1xf32>
    %147 = math.exp %146 : vector<8x1xf32>
    %cst_47 = arith.constant dense<0.000000e+00> : vector<1xf32>
    %148 = vector.multi_reduction <add>, %147, %cst_47 [0] : vector<8x1xf32> to vector<1xf32>
    %149 = vector.shape_cast %148 : vector<1xf32> to vector<1x1xf32>
    %150 = vector.broadcast %149 : vector<1x1xf32> to vector<8x1xf32>
    %151 = arith.divf %147, %150 : vector<8x1xf32>
    %152 = vector.broadcast %151 : vector<8x1xf32> to vector<8x128xf32>
    %153 = arith.mulf %152, %8 : vector<8x128xf32>
    %cst_48 = arith.constant dense<0.000000e+00> : vector<128xf32>
    %154 = vector.multi_reduction <add>, %153, %cst_48 [0] : vector<8x128xf32> to vector<128xf32>
    %155 = vector.shape_cast %154 : vector<128xf32> to vector<1x128xf32>
    %156 = arith.addf %131, %155 : vector<1x128xf32>
    %157 = arith.addf %156, %11 : vector<1x128xf32>
    %158 = vector.extract_strided_slice %157 {offsets = [0, 0], sizes = [1, 32], strides = [1, 1]} : vector<1x128xf32> to vector<1x32xf32>
    %159 = math.tanh %158 : vector<1x32xf32>
    %160 = vector.extract_strided_slice %157 {offsets = [0, 32], sizes = [1, 32], strides = [1, 1]} : vector<1x128xf32> to vector<1x32xf32>
    %161 = arith.negf %160 : vector<1x32xf32>
    %162 = math.exp %161 : vector<1x32xf32>
    %cst_49 = arith.constant 1.000000e+00 : f32
    %163 = vector.broadcast %cst_49 : f32 to vector<1x32xf32>
    %164 = arith.addf %163, %162 : vector<1x32xf32>
    %165 = arith.divf %163, %164 : vector<1x32xf32>
    %166 = vector.extract_strided_slice %157 {offsets = [0, 64], sizes = [1, 32], strides = [1, 1]} : vector<1x128xf32> to vector<1x32xf32>
    %167 = arith.negf %166 : vector<1x32xf32>
    %168 = math.exp %167 : vector<1x32xf32>
    %cst_50 = arith.constant 1.000000e+00 : f32
    %169 = vector.broadcast %cst_50 : f32 to vector<1x32xf32>
    %170 = arith.addf %169, %168 : vector<1x32xf32>
    %171 = arith.divf %169, %170 : vector<1x32xf32>
    %172 = vector.extract_strided_slice %157 {offsets = [0, 96], sizes = [1, 32], strides = [1, 1]} : vector<1x128xf32> to vector<1x32xf32>
    %173 = arith.negf %172 : vector<1x32xf32>
    %174 = math.exp %173 : vector<1x32xf32>
    %cst_51 = arith.constant 1.000000e+00 : f32
    %175 = vector.broadcast %cst_51 : f32 to vector<1x32xf32>
    %176 = arith.addf %175, %174 : vector<1x32xf32>
    %177 = arith.divf %175, %176 : vector<1x32xf32>
    %178 = arith.mulf %165, %159 : vector<1x32xf32>
    %179 = arith.mulf %171, %124 : vector<1x32xf32>
    %180 = arith.addf %178, %179 : vector<1x32xf32>
    %181 = math.tanh %180 : vector<1x32xf32>
    %182 = arith.mulf %177, %181 : vector<1x32xf32>
    %183 = arith.truncf %182 : vector<1x32xf32> to vector<1x32xbf16>
    %c0_52 = arith.constant 0 : index
    %c0_53 = arith.constant 0 : index
    %184 = vector.load %arg4[%c0_52, %c0_53] : memref<32x1152xbf16, #tpu.memory_space<vmem>>, vector<32x1152xbf16>
    %cst_54 = arith.constant dense<0.000000e+00> : vector<1x1152xf32>
    %185 = tpu.matmul %183, %184, %cst_54 {dimension_numbers = #tpu.dot_dimension_numbers<[1], [0], [0], [1], [0, 0, 1, 1], [], []>} : vector<1x32xbf16>, vector<32x1152xbf16>, vector<1x1152xf32> -> vector<1x1152xf32>
    %186 = vector.extract_strided_slice %185 {offsets = [0, 0], sizes = [1, 1024], strides = [1, 1]} : vector<1x1152xf32> to vector<1x1024xf32>
    %187 = vector.extract_strided_slice %185 {offsets = [0, 1024], sizes = [1, 128], strides = [1, 1]} : vector<1x1152xf32> to vector<1x128xf32>
    %188 = vector.broadcast %186 : vector<1x1024xf32> to vector<8x1024xf32>
    %189 = arith.addf %6, %188 : vector<8x1024xf32>
    %190 = math.tanh %189 : vector<8x1024xf32>
    %191 = vector.broadcast %9 : vector<1x1024xf32> to vector<8x1024xf32>
    %192 = arith.mulf %190, %191 : vector<8x1024xf32>
    %cst_55 = arith.constant dense<0.000000e+00> : vector<8xf32>
    %193 = vector.multi_reduction <add>, %192, %cst_55 [1] : vector<8x1024xf32> to vector<8xf32>
    %194 = vector.shape_cast %193 : vector<8xf32> to vector<8x1xf32>
    %195 = vector.broadcast %10 : vector<1x1xf32> to vector<8x1xf32>
    %196 = arith.addf %194, %195 : vector<8x1xf32>
    %cst_56 = arith.constant 0.000000e+00 : f32
    %197 = vector.broadcast %cst_56 : f32 to vector<8x1xf32>
    %198 = arith.maximumf %196, %197 : vector<8x1xf32>
    %cst_57 = arith.constant dense<0xFF800000> : vector<1xf32>
    %199 = vector.multi_reduction <maximumf>, %198, %cst_57 [0] : vector<8x1xf32> to vector<1xf32>
    %200 = vector.shape_cast %199 : vector<1xf32> to vector<1x1xf32>
    %201 = vector.broadcast %200 : vector<1x1xf32> to vector<8x1xf32>
    %202 = arith.subf %198, %201 : vector<8x1xf32>
    %203 = math.exp %202 : vector<8x1xf32>
    %cst_58 = arith.constant dense<0.000000e+00> : vector<1xf32>
    %204 = vector.multi_reduction <add>, %203, %cst_58 [0] : vector<8x1xf32> to vector<1xf32>
    %205 = vector.shape_cast %204 : vector<1xf32> to vector<1x1xf32>
    %206 = vector.broadcast %205 : vector<1x1xf32> to vector<8x1xf32>
    %207 = arith.divf %203, %206 : vector<8x1xf32>
    %208 = vector.broadcast %207 : vector<8x1xf32> to vector<8x128xf32>
    %209 = arith.mulf %208, %8 : vector<8x128xf32>
    %cst_59 = arith.constant dense<0.000000e+00> : vector<128xf32>
    %210 = vector.multi_reduction <add>, %209, %cst_59 [0] : vector<8x128xf32> to vector<128xf32>
    %211 = vector.shape_cast %210 : vector<128xf32> to vector<1x128xf32>
    %212 = arith.addf %187, %211 : vector<1x128xf32>
    %213 = arith.addf %212, %11 : vector<1x128xf32>
    %214 = vector.extract_strided_slice %213 {offsets = [0, 0], sizes = [1, 32], strides = [1, 1]} : vector<1x128xf32> to vector<1x32xf32>
    %215 = math.tanh %214 : vector<1x32xf32>
    %216 = vector.extract_strided_slice %213 {offsets = [0, 32], sizes = [1, 32], strides = [1, 1]} : vector<1x128xf32> to vector<1x32xf32>
    %217 = arith.negf %216 : vector<1x32xf32>
    %218 = math.exp %217 : vector<1x32xf32>
    %cst_60 = arith.constant 1.000000e+00 : f32
    %219 = vector.broadcast %cst_60 : f32 to vector<1x32xf32>
    %220 = arith.addf %219, %218 : vector<1x32xf32>
    %221 = arith.divf %219, %220 : vector<1x32xf32>
    %222 = vector.extract_strided_slice %213 {offsets = [0, 64], sizes = [1, 32], strides = [1, 1]} : vector<1x128xf32> to vector<1x32xf32>
    %223 = arith.negf %222 : vector<1x32xf32>
    %224 = math.exp %223 : vector<1x32xf32>
    %cst_61 = arith.constant 1.000000e+00 : f32
    %225 = vector.broadcast %cst_61 : f32 to vector<1x32xf32>
    %226 = arith.addf %225, %224 : vector<1x32xf32>
    %227 = arith.divf %225, %226 : vector<1x32xf32>
    %228 = vector.extract_strided_slice %213 {offsets = [0, 96], sizes = [1, 32], strides = [1, 1]} : vector<1x128xf32> to vector<1x32xf32>
    %229 = arith.negf %228 : vector<1x32xf32>
    %230 = math.exp %229 : vector<1x32xf32>
    %cst_62 = arith.constant 1.000000e+00 : f32
    %231 = vector.broadcast %cst_62 : f32 to vector<1x32xf32>
    %232 = arith.addf %231, %230 : vector<1x32xf32>
    %233 = arith.divf %231, %232 : vector<1x32xf32>
    %234 = arith.mulf %221, %215 : vector<1x32xf32>
    %235 = arith.mulf %227, %180 : vector<1x32xf32>
    %236 = arith.addf %234, %235 : vector<1x32xf32>
    %237 = math.tanh %236 : vector<1x32xf32>
    %238 = arith.mulf %233, %237 : vector<1x32xf32>
    %239 = tpu.concatenate %70, %126, %182, %238 in 1 : vector<1x32xf32>, vector<1x32xf32>, vector<1x32xf32>, vector<1x32xf32> -> vector<1x128xf32>
    %240 = vector.shape_cast %239 : vector<1x128xf32> to vector<1x1x128xf32>
    %c0_63 = arith.constant 0 : index
    %c0_64 = arith.constant 0 : index
    %c0_65 = arith.constant 0 : index
    %241 = vector.load %arg10[%c0_63, %c0_64, %c0_65] : memref<1x1x128xf32, #tpu.memory_space<vmem>>, vector<1x1x128xf32>
    tpu.vector_store %arg10[%c0_63, %c0_64, %c0_65], %240 {strides = array<i32>} : memref<1x1x128xf32, #tpu.memory_space<vmem>>, vector<1x1x128xf32>,
    return
  }
  func.func @transform_0(%arg0: i32) -> (i32, i32, i32) {
    %c0_i32 = arith.constant 0 : i32
    %c0_i32_0 = arith.constant 0 : i32
    %c0_i32_1 = arith.constant 0 : i32
    return %arg0, %c0_i32, %c0_i32_0 : i32, i32, i32
  }
  func.func @transform_1(%arg0: i32) -> (i32, i32, i32) {
    %c0_i32 = arith.constant 0 : i32
    %c0_i32_0 = arith.constant 0 : i32
    %c0_i32_1 = arith.constant 0 : i32
    return %arg0, %c0_i32, %c0_i32_0 : i32, i32, i32
  }
  func.func @transform_2(%arg0: i32) -> (i32, i32) {
    %c0_i32 = arith.constant 0 : i32
    %c0_i32_0 = arith.constant 0 : i32
    %c0_i32_1 = arith.constant 0 : i32
    return %c0_i32, %c0_i32_0 : i32, i32
  }
  func.func @transform_3(%arg0: i32) -> (i32, i32) {
    %c0_i32 = arith.constant 0 : i32
    %c0_i32_0 = arith.constant 0 : i32
    %c0_i32_1 = arith.constant 0 : i32
    return %c0_i32, %c0_i32_0 : i32, i32
  }
  func.func @transform_4(%arg0: i32) -> (i32, i32) {
    %c0_i32 = arith.constant 0 : i32
    %c0_i32_0 = arith.constant 0 : i32
    %c0_i32_1 = arith.constant 0 : i32
    return %c0_i32, %c0_i32_0 : i32, i32
  }
  func.func @transform_5(%arg0: i32) -> (i32, i32) {
    %c0_i32 = arith.constant 0 : i32
    %c0_i32_0 = arith.constant 0 : i32
    %c0_i32_1 = arith.constant 0 : i32
    return %c0_i32, %c0_i32_0 : i32, i32
  }
  func.func @transform_6(%arg0: i32) -> (i32, i32) {
    %c0_i32 = arith.constant 0 : i32
    %c0_i32_0 = arith.constant 0 : i32
    %c0_i32_1 = arith.constant 0 : i32
    return %c0_i32, %c0_i32_0 : i32, i32
  }
  func.func @transform_7(%arg0: i32) -> (i32, i32) {
    %c0_i32 = arith.constant 0 : i32
    %c0_i32_0 = arith.constant 0 : i32
    %c0_i32_1 = arith.constant 0 : i32
    return %c0_i32, %c0_i32_0 : i32, i32
  }
  func.func @transform_8(%arg0: i32) -> (i32, i32) {
    %c0_i32 = arith.constant 0 : i32
    %c0_i32_0 = arith.constant 0 : i32
    %c0_i32_1 = arith.constant 0 : i32
    return %c0_i32, %c0_i32_0 : i32, i32
  }
  func.func @transform_9(%arg0: i32) -> (i32, i32, i32) {
    %c0_i32 = arith.constant 0 : i32
    %c0_i32_0 = arith.constant 0 : i32
    %c0_i32_1 = arith.constant 0 : i32
    return %arg0, %c0_i32, %c0_i32_0 : i32, i32, i32
  }
}

</mosaic_0001>

<llo_original>
// kernel: tpu_custom_call.1
$region0: #{tpu_custom_call.1}
  #allocation0 [shape = 'u32[]', space=smem, size = 0x4, offset = 0x4, fixed_abs, tag = 'smem constant byte address 0x4 - core index']
  #allocation1 [shape = 'u32[144,128]{1,0:T(1,128)}', space=vmem, size = 0x12000, scoped, tag = 'internal scratch']
  #allocation2 [shape = 'f32[1,1]{1,0:T(1,128)S(1)}', space=vmem, size = 0x200, scoped, tag = 'scoped memory for tpu_custom_call.1']
  %s0 = inlined_call_operand.hbm [shape: bf16[2,8,32], index: 0, kind: input, shape index: {}]
  %s1 = inlined_call_operand.vmem [shape: f32[2,1,32], index: 1, kind: input, shape index: {}]
  %s2 = inlined_call_operand.hbm [shape: bf16[32,1024], index: 2, kind: input, shape index: {}]
  %s3 = inlined_call_operand.hbm [shape: bf16[32,1152], index: 3, kind: input, shape index: {}]
  %s4 = inlined_call_operand.vmem [shape: f32[1,1024], index: 4, kind: input, shape index: {}]
  %s5 = inlined_call_operand.hbm [shape: f32[1,1024], index: 5, kind: input, shape index: {}]
  %s6 = inlined_call_operand.<no memory space> [shape: f32[1,1], index: 6, kind: input, shape index: {}]
  %s7 = inlined_call_operand.vmem [shape: bf16[32,128], index: 7, kind: input, shape index: {}]
  %s8 = inlined_call_operand.vmem [shape: f32[1,128], index: 8, kind: input, shape index: {}]
  %s9 = inlined_call_operand.hbm [shape: f32[2,1,128], index: 9, kind: output, shape index: {}]
  %s10 = sld [smem:[#allocation0]]
  $region85: #{tpu_custom_call.1} parent=0
    _
  %s12 = ssub.s32 1, %s10
  %s13 = scalar_select 0, %s12, %s10
  %v14 = vstv %s6
  %15 = vst [vmem:[#allocation2] sm:$0x1] %v14
  $region1: #{tpu_custom_call.1} parent=0
    #allocation3 [shape = 'u8[4096]{0}', space=vmem, size = 0x1000, scoped, tag = 'input window, operand 0']
    #allocation4 [shape = 's32[2]{0}', space=sflag, size = 0x8, scoped, tag = 'scoped memory for tpu_custom_call.1']
    #allocation5 [shape = 's32[2]{0}', space=sflag, size = 0x8, scoped, tag = 'scoped memory for tpu_custom_call.1']
    #allocation6 [shape = 'u8[65536]{0}', space=vmem, size = 0x10000, scoped, tag = 'input window, operand 2, single buffered']
    #allocation7 [shape = 's32[1]{0}', space=sflag, size = 0x4, scoped, tag = 'scoped memory for tpu_custom_call.1']
    #allocation8 [shape = 'u8[73728]{0}', space=vmem, size = 0x12000, scoped, tag = 'input window, operand 3, single buffered']
    #allocation9 [shape = 'u8[4096]{0}', space=vmem, size = 0x1000, scoped, tag = 'input window, operand 5, single buffered']
    #allocation10 [shape = 's32[1]{0}', space=sflag, size = 0x4, scoped, tag = 'scoped memory for tpu_custom_call.1']
    #allocation11 [shape = 'u8[1024]{0}', space=vmem, size = 0x400, scoped, tag = 'output window, operand 0']
    %16 = vsyncpa [#allocation4], 0
    %s17 = scalar_lea.sflag [#allocation4], 1
    %18 = vsyncpa %s17, 0
    %19 = vsyncpa [#allocation7], 0
    %20 = vsyncpa [#allocation10], 0
    %21 = vsyncpa [#allocation5], 0
    %s22 = scalar_lea.sflag [#allocation5], 1
    %23 = vsyncpa %s22, 0
    loop: start=0, step=1, limit=4
    $region2: #{tpu_custom_call.1} parent=1 // loop_pre_header
      _
    $region3: #{tpu_custom_call.1} parent=1 // loop_header
      %s25 = sphi 0, %s29
      %p26 = scmp.ge.s32.totalorder %s25, 4
      %s35 = sphi 0, %s37
      %s38 = sphi 0, %s35
      %s39 = sphi 0, %s38
      %s55 = sphi 0, %s39
      %s61 = sphi 0, %s63
      %s64 = sphi 0, %s61
      %s65 = sphi 0, %s64
      %s81 = sphi 0, %s65
      %s85 = sphi 0, %s85
      %s87 = sphi 0, %s85
      %s88 = sphi 0, %s87
      %s102 = sphi 0, %s88
      %s106 = sphi 0, %s106
      %s108 = sphi 0, %s106
      %s109 = sphi 0, %s108
      %s123 = sphi 0, %s109
      %s127 = sphi 0, %s127
      %s129 = sphi 0, %s127
      %s130 = sphi 0, %s129
      %s144 = sphi 0, %s130
      %s148 = sphi 0, %s148
      %s150 = sphi 0, %s148
      %s151 = sphi 0, %s150
      %s165 = sphi 0, %s151
      %s169 = sphi 0, %s169
      %s171 = sphi 0, %s169
      %s172 = sphi 0, %s171
      %s186 = sphi 0, %s172
      %s190 = sphi 0, %s190
      %s192 = sphi 0, %s190
      %s193 = sphi 0, %s192
      %s207 = sphi 0, %s193
      %s211 = sphi 0, %s211
      %s213 = sphi 0, %s211
      %s214 = sphi 0, %s213
      %s228 = sphi 0, %s214
      %s234 = sphi 0, %s236
      %s237 = sphi 0, %s234
      %s238 = sphi 0, %s237
      %s254 = sphi 0, %s238
    $region4: #{tpu_custom_call.1} parent=1 // loop_header_branch
      %28 = sbr.rel (%p26) target = $region8
    $region5: #{tpu_custom_call.1} parent=1 // loop_body
      %s30 = ssub.s32 %s25, 1
      %s31 = ssub.s32 %s25, 2
      %s32 = sadd.s32 %s25, 1
      %s33 = ssub.s32 %s25, %s32
      %p34 = scmp.eq.s32.totalorder %s33, 0
      %s36 = sadd.s32 %s35, 1
      %s37 = scalar_select %p34, %s35, %s36
      %p40 = pneg %p34
      %p41 = scmp.eq.s32.totalorder %s25, 1
      %p42 = por %p40, %p41
      %p43 = scmp.ne.s32.totalorder %s35, %s38
      %p44 = scmp.eq.s32.totalorder %s25, 0
      %p45 = por %p43, %p44
      %p46 = scmp.ne.s32.totalorder %s35, %s38
      %p47 = scmp.eq.s32.totalorder %s30, 1
      %p48 = por %p46, %p47
      %p49 = scmp.ne.s32.totalorder %s38, %s39
      %p50 = scmp.eq.s32.totalorder %s30, 0
      %p51 = por %p49, %p50
      %p52 = scmp.ne.s32.totalorder %s38, %s39
      %p53 = scmp.eq.s32.totalorder %s31, 1
      %p54 = por %p52, %p53
      %p56 = scmp.ne.s32.totalorder %s39, %s55
      %p57 = scmp.eq.s32.totalorder %s31, 0
      %p58 = por %p56, %p57
      %s59 = ssub.s32 %s25, %s32
      %p60 = scmp.eq.s32.totalorder %s59, 0
      %s62 = sadd.s32 %s61, 1
      %s63 = scalar_select %p60, %s61, %s62
      %p66 = pneg %p60
      %p67 = scmp.eq.s32.totalorder %s25, 1
      %p68 = por %p66, %p67
      %p69 = scmp.ne.s32.totalorder %s61, %s64
      %p70 = scmp.eq.s32.totalorder %s25, 0
      %p71 = por %p69, %p70
      %p72 = scmp.ne.s32.totalorder %s61, %s64
      %p73 = scmp.eq.s32.totalorder %s30, 1
      %p74 = por %p72, %p73
      %p75 = scmp.ne.s32.totalorder %s64, %s65
      %p76 = scmp.eq.s32.totalorder %s30, 0
      %p77 = por %p75, %p76
      %p78 = scmp.ne.s32.totalorder %s64, %s65
      %p79 = scmp.eq.s32.totalorder %s31, 1
      %p80 = por %p78, %p79
      %p82 = scmp.ne.s32.totalorder %s65, %s81
      %p83 = scmp.eq.s32.totalorder %s31, 0
      %p84 = por %p82, %p83
      %s86 = sadd.s32 %s85, 1
      %p89 = scmp.eq.s32.totalorder %s25, 1
      %p90 = scmp.ne.s32.totalorder %s85, %s87
      %p91 = scmp.eq.s32.totalorder %s25, 0
      %p92 = por %p90, %p91
      %p93 = scmp.ne.s32.totalorder %s85, %s87
      %p94 = scmp.eq.s32.totalorder %s30, 1
      %p95 = por %p93, %p94
      %p96 = scmp.ne.s32.totalorder %s87, %s88
      %p97 = scmp.eq.s32.totalorder %s30, 0
      %p98 = por %p96, %p97
      %p99 = scmp.ne.s32.totalorder %s87, %s88
      %p100 = scmp.eq.s32.totalorder %s31, 1
      %p101 = por %p99, %p100
      %p103 = scmp.ne.s32.totalorder %s88, %s102
      %p104 = scmp.eq.s32.totalorder %s31, 0
      %p105 = por %p103, %p104
      %s107 = sadd.s32 %s106, 1
      %p110 = scmp.eq.s32.totalorder %s25, 1
      %p111 = scmp.ne.s32.totalorder %s106, %s108
      %p112 = scmp.eq.s32.totalorder %s25, 0
      %p113 = por %p111, %p112
      %p114 = scmp.ne.s32.totalorder %s106, %s108
      %p115 = scmp.eq.s32.totalorder %s30, 1
      %p116 = por %p114, %p115
      %p117 = scmp.ne.s32.totalorder %s108, %s109
      %p118 = scmp.eq.s32.totalorder %s30, 0
      %p119 = por %p117, %p118
      %p120 = scmp.ne.s32.totalorder %s108, %s109
      %p121 = scmp.eq.s32.totalorder %s31, 1
      %p122 = por %p120, %p121
      %p124 = scmp.ne.s32.totalorder %s109, %s123
      %p125 = scmp.eq.s32.totalorder %s31, 0
      %p126 = por %p124, %p125
      %s128 = sadd.s32 %s127, 1
      %p131 = scmp.eq.s32.totalorder %s25, 1
      %p132 = scmp.ne.s32.totalorder %s127, %s129
      %p133 = scmp.eq.s32.totalorder %s25, 0
      %p134 = por %p132, %p133
      %p135 = scmp.ne.s32.totalorder %s127, %s129
      %p136 = scmp.eq.s32.totalorder %s30, 1
      %p137 = por %p135, %p136
      %p138 = scmp.ne.s32.totalorder %s129, %s130
      %p139 = scmp.eq.s32.totalorder %s30, 0
      %p140 = por %p138, %p139
      %p141 = scmp.ne.s32.totalorder %s129, %s130
      %p142 = scmp.eq.s32.totalorder %s31, 1
      %p143 = por %p141, %p142
      %p145 = scmp.ne.s32.totalorder %s130, %s144
      %p146 = scmp.eq.s32.totalorder %s31, 0
      %p147 = por %p145, %p146
      %s149 = sadd.s32 %s148, 1
      %p152 = scmp.eq.s32.totalorder %s25, 1
      %p153 = scmp.ne.s32.totalorder %s148, %s150
      %p154 = scmp.eq.s32.totalorder %s25, 0
      %p155 = por %p153, %p154
      %p156 = scmp.ne.s32.totalorder %s148, %s150
      %p157 = scmp.eq.s32.totalorder %s30, 1
      %p158 = por %p156, %p157
      %p159 = scmp.ne.s32.totalorder %s150, %s151
      %p160 = scmp.eq.s32.totalorder %s30, 0
      %p161 = por %p159, %p160
      %p162 = scmp.ne.s32.totalorder %s150, %s151
      %p163 = scmp.eq.s32.totalorder %s31, 1
      %p164 = por %p162, %p163
      %p166 = scmp.ne.s32.totalorder %s151, %s165
      %p167 = scmp.eq.s32.totalorder %s31, 0
      %p168 = por %p166, %p167
      %s170 = sadd.s32 %s169, 1
      %p173 = scmp.eq.s32.totalorder %s25, 1
      %p174 = scmp.ne.s32.totalorder %s169, %s171
      %p175 = scmp.eq.s32.totalorder %s25, 0
      %p176 = por %p174, %p175
      %p177 = scmp.ne.s32.totalorder %s169, %s171
      %p178 = scmp.eq.s32.totalorder %s30, 1
      %p179 = por %p177, %p178
      %p180 = scmp.ne.s32.totalorder %s171, %s172
      %p181 = scmp.eq.s32.totalorder %s30, 0
      %p182 = por %p180, %p181
      %p183 = scmp.ne.s32.totalorder %s171, %s172
      %p184 = scmp.eq.s32.totalorder %s31, 1
      %p185 = por %p183, %p184
      %p187 = scmp.ne.s32.totalorder %s172, %s186
      %p188 = scmp.eq.s32.totalorder %s31, 0
      %p189 = por %p187, %p188
      %s191 = sadd.s32 %s190, 1
      %p194 = scmp.eq.s32.totalorder %s25, 1
      %p195 = scmp.ne.s32.totalorder %s190, %s192
      %p196 = scmp.eq.s32.totalorder %s25, 0
      %p197 = por %p195, %p196
      %p198 = scmp.ne.s32.totalorder %s190, %s192
      %p199 = scmp.eq.s32.totalorder %s30, 1
      %p200 = por %p198, %p199
      %p201 = scmp.ne.s32.totalorder %s192, %s193
      %p202 = scmp.eq.s32.totalorder %s30, 0
      %p203 = por %p201, %p202
      %p204 = scmp.ne.s32.totalorder %s192, %s193
      %p205 = scmp.eq.s32.totalorder %s31, 1
      %p206 = por %p204, %p205
      %p208 = scmp.ne.s32.totalorder %s193, %s207
      %p209 = scmp.eq.s32.totalorder %s31, 0
      %p210 = por %p208, %p209
      %s212 = sadd.s32 %s211, 1
      %p215 = scmp.eq.s32.totalorder %s25, 1
      %p216 = scmp.ne.s32.totalorder %s211, %s213
      %p217 = scmp.eq.s32.totalorder %s25, 0
      %p218 = por %p216, %p217
      %p219 = scmp.ne.s32.totalorder %s211, %s213
      %p220 = scmp.eq.s32.totalorder %s30, 1
      %p221 = por %p219, %p220
      %p222 = scmp.ne.s32.totalorder %s213, %s214
      %p223 = scmp.eq.s32.totalorder %s30, 0
      %p224 = por %p222, %p223
      %p225 = scmp.ne.s32.totalorder %s213, %s214
      %p226 = scmp.eq.s32.totalorder %s31, 1
      %p227 = por %p225, %p226
      %p229 = scmp.ne.s32.totalorder %s214, %s228
      %p230 = scmp.eq.s32.totalorder %s31, 0
      %p231 = por %p229, %p230
      %s232 = ssub.s32 %s25, %s32
      %p233 = scmp.eq.s32.totalorder %s232, 0
      %s235 = sadd.s32 %s234, 1
      %s236 = scalar_select %p233, %s234, %s235
      %p239 = pneg %p233
      %p240 = scmp.eq.s32.totalorder %s25, 1
      %p241 = por %p239, %p240
      %p242 = scmp.ne.s32.totalorder %s234, %s237
      %p243 = scmp.eq.s32.totalorder %s25, 0
      %p244 = por %p242, %p243
      %p245 = scmp.ne.s32.totalorder %s234, %s237
      %p246 = scmp.eq.s32.totalorder %s30, 1
      %p247 = por %p245, %p246
      %p248 = scmp.ne.s32.totalorder %s237, %s238
      %p249 = scmp.eq.s32.totalorder %s30, 0
      %p250 = por %p248, %p249
      %p251 = scmp.ne.s32.totalorder %s237, %s238
      %p252 = scmp.eq.s32.totalorder %s31, 1
      %p253 = por %p251, %p252
      %p255 = scmp.ne.s32.totalorder %s238, %s254
      %p256 = scmp.eq.s32.totalorder %s31, 0
      %p257 = por %p255, %p256
      %p258 = scmp.le.s32.totalorder 1, %s25
      %p259 = scmp.lt.s32.totalorder %s25, 3
      %p260 = pnand %p258, %p259
      %p261 = pneg %p260
      // Predicated region
      $region9: #{tpu_custom_call.1} parent=5 // pred_check
        _
      $region10: #{tpu_custom_call.1} parent=5 // pred_check_branch
        %263 = sbr.rel (%p260) target = $region12
      $region11: #{tpu_custom_call.1} parent=5 // pred_region
        %s264 = ssub.s32 %s25, 1
        // Predicated region
        $region13: #{tpu_custom_call.1} parent=11 // pred_check
          %p265 = pneg %p98
        $region14: #{tpu_custom_call.1} parent=11 // pred_check_branch
          %267 = sbr.rel (%p265) target = $region16
        $region15: #{tpu_custom_call.1} parent=11 // pred_region
          %s269 = ssub.s32 2048, 2048
          %270 = vsyncadd [#allocation7], %s269
          %s271 = sshll.u32 [#allocation6], 4
          %s272 = int_to_ptr.vmem [resolvable:$true] %s271
          %277 = dma.hbm_to_vmem [thread:$0]  %s2, 2048, %s272, [#allocation7], 512, 512, 32
        $region16: #{tpu_custom_call.1} parent=11 // pred_fallthru
          _
        // Predicated region
        $region17: #{tpu_custom_call.1} parent=11 // pred_check
          %p278 = pneg %p119
        $region18: #{tpu_custom_call.1} parent=11 // pred_check_branch
          %280 = sbr.rel (%p278) target = $region20
        $region19: #{tpu_custom_call.1} parent=11 // pred_region
          %s282 = ssub.s32 2304, 2304
          %283 = vsyncadd [#allocation7], %s282
          %s284 = sshll.u32 [#allocation8], 4
          %s285 = int_to_ptr.vmem [resolvable:$true] %s284
          %290 = dma.hbm_to_vmem [thread:$0]  %s3, 2304, %s285, [#allocation7], 576, 576, 36
        $region20: #{tpu_custom_call.1} parent=11 // pred_fallthru
          _
        // Predicated region
        $region21: #{tpu_custom_call.1} parent=11 // pred_check
          %p291 = pneg %p140
        $region22: #{tpu_custom_call.1} parent=11 // pred_check_branch
          %293 = sbr.rel (%p291) target = $region24
        $region23: #{tpu_custom_call.1} parent=11 // pred_region
          _
        $region24: #{tpu_custom_call.1} parent=11 // pred_fallthru
          _
        // Predicated region
        $region25: #{tpu_custom_call.1} parent=11 // pred_check
          %p294 = pneg %p161
        $region26: #{tpu_custom_call.1} parent=11 // pred_check_branch
          %296 = sbr.rel (%p294) target = $region28
        $region27: #{tpu_custom_call.1} parent=11 // pred_region
          %s298 = ssub.s32 128, 128
          %299 = vsyncadd [#allocation10], %s298
          %s301 = sshll.u32 [#allocation9], 4
          %s302 = int_to_ptr.vmem [resolvable:$true] %s301
          %304 = dma.hbm_to_vmem [thread:$0]  %s5, 128, %s302, [#allocation10]
        $region28: #{tpu_custom_call.1} parent=11 // pred_fallthru
          _
        // Predicated region
        $region29: #{tpu_custom_call.1} parent=11 // pred_check
          %p305 = pneg %p182
        $region30: #{tpu_custom_call.1} parent=11 // pred_check_branch
          %307 = sbr.rel (%p305) target = $region32
        $region31: #{tpu_custom_call.1} parent=11 // pred_region
          _
        $region32: #{tpu_custom_call.1} parent=11 // pred_fallthru
          _
        // Predicated region
        $region33: #{tpu_custom_call.1} parent=11 // pred_check
          %p308 = pneg %p203
        $region34: #{tpu_custom_call.1} parent=11 // pred_check_branch
          %310 = sbr.rel (%p308) target = $region36
        $region35: #{tpu_custom_call.1} parent=11 // pred_region
          _
        $region36: #{tpu_custom_call.1} parent=11 // pred_fallthru
          _
        // Predicated region
        $region37: #{tpu_custom_call.1} parent=11 // pred_check
          %p311 = pneg %p224
        $region38: #{tpu_custom_call.1} parent=11 // pred_check_branch
          %313 = sbr.rel (%p311) target = $region40
        $region39: #{tpu_custom_call.1} parent=11 // pred_region
          _
        $region40: #{tpu_custom_call.1} parent=11 // pred_fallthru
          _
      $region12: #{tpu_custom_call.1} parent=5 // pred_fallthru
        _
      %p314 = scmp.lt.s32.totalorder %s25, 2
      // Predicated region
      $region41: #{tpu_custom_call.1} parent=5 // pred_check
        %p315 = pneg %p314
      $region42: #{tpu_custom_call.1} parent=5 // pred_check_branch
        %317 = sbr.rel (%p315) target = $region44
      $region43: #{tpu_custom_call.1} parent=5 // pred_region
        // Predicated region
        $region45: #{tpu_custom_call.1} parent=43 // pred_check
          %p318 = pneg %p45
        $region46: #{tpu_custom_call.1} parent=43 // pred_check_branch
          %320 = sbr.rel (%p318) target = $region48
        $region47: #{tpu_custom_call.1} parent=43 // pred_region
          %s321 = sand.u32 %s35, 1
          %s322 = scalar_lea.sflag [#allocation4], %s321
          %s323 = sand.u32 %s35, 1
          %s324 = smul.addr %s323, 4
          %s325 = scalar_lea.vmem [#allocation3], %s324
          %s327 = ssub.s32 64, 64
          %328 = vsyncadd %s322, %s327
          %s329 = smul.addr %s25, 64
          %s330 = scalar_lea.hbm %s0, %s329
          %s332 = sshll.u32 %s325, 4
          %s333 = int_to_ptr.vmem [resolvable:$true] %s332
          %335 = dma.hbm_to_vmem [thread:$0]  %s330, 64, %s333, %s322
        $region48: #{tpu_custom_call.1} parent=43 // pred_fallthru
          _
        // Predicated region
        $region49: #{tpu_custom_call.1} parent=43 // pred_check
          %p336 = pneg %p71
        $region50: #{tpu_custom_call.1} parent=43 // pred_check_branch
          %338 = sbr.rel (%p336) target = $region52
        $region51: #{tpu_custom_call.1} parent=43 // pred_region
          %p339 = scmp.lt.s32.totalorder %s25, 1
          %s340 = scalar_select %p339, %s25, 1
          %s341 = scalar_lea.vmem %s1, %s340
        $region52: #{tpu_custom_call.1} parent=43 // pred_fallthru
          _
      $region44: #{tpu_custom_call.1} parent=5 // pred_fallthru
        _
      %p342 = scmp.le.s32.totalorder 1, %s25
      %p343 = scmp.lt.s32.totalorder %s25, 3
      %p344 = pnand %p342, %p343
      %p345 = pneg %p344
      // Predicated region
      $region53: #{tpu_custom_call.1} parent=5 // pred_check
        _
      $region54: #{tpu_custom_call.1} parent=5 // pred_check_branch
        %347 = sbr.rel (%p344) target = $region56
      $region55: #{tpu_custom_call.1} parent=5 // pred_region
        %s348 = ssub.s32 %s25, 1
        %s349 = sand.u32 %s38, 1
        %s350 = scalar_lea.sflag [#allocation4], %s349
        %s351 = sand.u32 %s38, 1
        %s352 = smul.addr %s351, 4
        %s353 = scalar_lea.vmem [#allocation3], %s352
        // Predicated region
        $region57: #{tpu_custom_call.1} parent=55 // pred_check
          %p354 = pneg %p51
        $region58: #{tpu_custom_call.1} parent=55 // pred_check_branch
          %356 = sbr.rel (%p354) target = $region60
        $region59: #{tpu_custom_call.1} parent=55 // pred_region
          %357 = dma.done %s350, 64
        $region60: #{tpu_custom_call.1} parent=55 // pred_fallthru
          _
        // Predicated region
        $region61: #{tpu_custom_call.1} parent=55 // pred_check
          %p358 = pneg %p98
        $region62: #{tpu_custom_call.1} parent=55 // pred_check_branch
          %360 = sbr.rel (%p358) target = $region64
        $region63: #{tpu_custom_call.1} parent=55 // pred_region
          %361 = dma.done [#allocation7], 2048
        $region64: #{tpu_custom_call.1} parent=55 // pred_fallthru
          _
        // Predicated region
        $region65: #{tpu_custom_call.1} parent=55 // pred_check
          %p362 = pneg %p119
        $region66: #{tpu_custom_call.1} parent=55 // pred_check_branch
          %364 = sbr.rel (%p362) target = $region68
        $region67: #{tpu_custom_call.1} parent=55 // pred_region
          %365 = dma.done [#allocation7], 2304
        $region68: #{tpu_custom_call.1} parent=55 // pred_fallthru
          _
        // Predicated region
        $region69: #{tpu_custom_call.1} parent=55 // pred_check
          %p366 = pneg %p161
        $region70: #{tpu_custom_call.1} parent=55 // pred_check_branch
          %368 = sbr.rel (%p366) target = $region72
        $region71: #{tpu_custom_call.1} parent=55 // pred_region
          %369 = dma.done [#allocation10], 128
        $region72: #{tpu_custom_call.1} parent=55 // pred_fallthru
          _
        %s370 = sand.u32 %s38, 1
        %s371 = scalar_lea.sflag [#allocation4], %s370
        %s372 = sand.u32 %s38, 1
        %s373 = smul.addr %s372, 4
        %s374 = scalar_lea.vmem [#allocation3], %s373
        %p375 = pneg %p51
        %p376 = pneg %p48
        %p377 = scmp.lt.s32.totalorder %s30, 1
        %s378 = scalar_select %p377, %s30, 1
        %s379 = scalar_lea.vmem %s1, %s378
        %p380 = pneg %p77
        %p381 = pneg %p74
        %p382 = pneg %p98
        %p383 = pneg %p95
        %p384 = pneg %p119
        %p385 = pneg %p116
        %p386 = pneg %p140
        %p387 = pneg %p137
        %p388 = pneg %p161
        %p389 = pneg %p158
        %p390 = pneg %p182
        %p391 = pneg %p179
        %p392 = pneg %p203
        %p393 = pneg %p200
        %p394 = pneg %p224
        %p395 = pneg %p221
        %p396 = pneg %p250
        %p397 = pneg %p247
        %s398 = sand.u32 %s237, 1
        %s399 = scalar_lea.sflag [#allocation5], %s398
        %s400 = sand.u32 %s237, 1
        %s401 = scalar_lea.vmem [#allocation11], %s400
        %p402 = scmp.lt.s32.totalorder %s30, 1
        %s403 = scalar_select %p402, %s30, 1
        %s404 = scalar_lea.vmem %s1, %s403
        %v406 = vld [vmem:[%s353] sm:$0xf]
        %v407 = vld [vmem:[#allocation6] sm:$0xff]
        %v408 = vld [vmem:[#allocation6 + $0x8] sm:$0xff]
        %v409 = vld [vmem:[#allocation6 + $0x10] sm:$0xff]
        %v410 = vld [vmem:[#allocation6 + $0x18] sm:$0xff]
        %v411 = vld [vmem:[#allocation6 + $0x20] sm:$0xff]
        %v412 = vld [vmem:[#allocation6 + $0x28] sm:$0xff]
        %v413 = vld [vmem:[#allocation6 + $0x30] sm:$0xff]
        %v414 = vld [vmem:[#allocation6 + $0x38] sm:$0xff]
        %v415 = vld [vmem:[#allocation6 + $0x40] sm:$0xff]
        %v416 = vld [vmem:[#allocation6 + $0x48] sm:$0xff]
        %v417 = vld [vmem:[#allocation6 + $0x50] sm:$0xff]
        %v418 = vld [vmem:[#allocation6 + $0x58] sm:$0xff]
        %v419 = vld [vmem:[#allocation6 + $0x60] sm:$0xff]
        %v420 = vld [vmem:[#allocation6 + $0x68] sm:$0xff]
        %v421 = vld [vmem:[#allocation6 + $0x70] sm:$0xff]
        %v422 = vld [vmem:[#allocation6 + $0x78] sm:$0xff]
        %v423 = vld [vmem:[%s4] sm:$0xff]
        %v425 = vlaneseq
        %v426 = vshrl.u32 %v425, 7
        %v427 = vsub.s32 0, %v426
        %v428 = vrot.slane %v423, %v427
        %v429 = vlaneseq
        %v430 = vshrl.u32 %v429, 7
        %v431 = vsub.s32 1, %v430
        %v432 = vrot.slane %v423, %v431
        %v433 = vlaneseq
        %v434 = vshrl.u32 %v433, 7
        %v435 = vsub.s32 2, %v434
        %v436 = vrot.slane %v423, %v435
        %v437 = vlaneseq
        %v438 = vshrl.u32 %v437, 7
        %v439 = vsub.s32 3, %v438
        %v440 = vrot.slane %v423, %v439
        %v441 = vlaneseq
        %v442 = vshrl.u32 %v441, 7
        %v443 = vsub.s32 4, %v442
        %v444 = vrot.slane %v423, %v443
        %v445 = vlaneseq
        %v446 = vshrl.u32 %v445, 7
        %v447 = vsub.s32 5, %v446
        %v448 = vrot.slane %v423, %v447
        %v449 = vlaneseq
        %v450 = vshrl.u32 %v449, 7
        %v451 = vsub.s32 6, %v450
        %v452 = vrot.slane %v423, %v451
        %v453 = vlaneseq
        %v454 = vshrl.u32 %v453, 7
        %v455 = vsub.s32 7, %v454
        %v456 = vrot.slane %v423, %v455
        %v481 = vunpack.c.l.b16 %v407
        %v482 = vunpack.c.h.b16 %v407
        %v483 = vunpack.c.l.b16 %v408
        %v484 = vunpack.c.h.b16 %v408
        %v485 = vunpack.c.l.b16 %v409
        %v486 = vunpack.c.h.b16 %v409
        %v487 = vunpack.c.l.b16 %v410
        %v488 = vunpack.c.h.b16 %v410
        %v489 = vunpack.c.l.b16 %v411
        %v490 = vunpack.c.h.b16 %v411
        %v491 = vunpack.c.l.b16 %v412
        %v492 = vunpack.c.h.b16 %v412
        %v493 = vunpack.c.l.b16 %v413
        %v494 = vunpack.c.h.b16 %v413
        %v495 = vunpack.c.l.b16 %v414
        %v496 = vunpack.c.h.b16 %v414
        %v497 = vunpack.c.l.b16 %v415
        %v498 = vunpack.c.h.b16 %v415
        %v499 = vunpack.c.l.b16 %v416
        %v500 = vunpack.c.h.b16 %v416
        %v501 = vunpack.c.l.b16 %v417
        %v502 = vunpack.c.h.b16 %v417
        %v503 = vunpack.c.l.b16 %v418
        %v504 = vunpack.c.h.b16 %v418
        %v505 = vunpack.c.l.b16 %v419
        %v506 = vunpack.c.h.b16 %v419
        %v507 = vunpack.c.l.b16 %v420
        %v508 = vunpack.c.h.b16 %v420
        %v509 = vunpack.c.l.b16 %v421
        %v510 = vunpack.c.h.b16 %v421
        %v511 = vunpack.c.l.b16 %v422
        %v512 = vunpack.c.h.b16 %v422
        %v513 = vpack.c.b16 %v489, %v481
        %v514 = vpack.c.b16 %v490, %v482
        %v515 = vpack.c.b16 %v491, %v483
        %v516 = vpack.c.b16 %v492, %v484
        %v517 = vpack.c.b16 %v493, %v485
        %v518 = vpack.c.b16 %v494, %v486
        %v519 = vpack.c.b16 %v495, %v487
        %v520 = vpack.c.b16 %v496, %v488
        %v521 = vpack.c.b16 %v505, %v497
        %v522 = vpack.c.b16 %v506, %v498
        %v523 = vpack.c.b16 %v507, %v499
        %v524 = vpack.c.b16 %v508, %v500
        %v525 = vpack.c.b16 %v509, %v501
        %v526 = vpack.c.b16 %v510, %v502
        %v527 = vpack.c.b16 %v511, %v503
        %v528 = vpack.c.b16 %v512, %v504
        %vm545 = vcmask 261120
        %v547 = vsel %vm545, %v406, 0
        %549 = vmatprep.subr.bf16.mxu0 %v514
        %550 = vmatpush1.bf16.msra.mxu0 %v513
        %551 = vmatprep.subr.bf16.mxu0 %v522
        %552 = vmatpush1.bf16.msra.mxu0 %v521
        %553 = vmatprep.subr.bf16.mxu0 0
        %554 = vmatpush1.bf16.msra.mxu0 0
        %555 = vmatprep.subr.bf16.mxu0 0
        %556 = vmatpush1.bf16.msra.mxu0 0
        %557 = vmatprep.subr.bf16.mxu0 0
        %558 = vmatpush1.bf16.msra.mxu0 0
        %559 = vmatprep.subr.bf16.mxu0 0
        %560 = vmatpush1.bf16.msra.mxu0 0
        %561 = vmatprep.subr.bf16.mxu0 0
        %562 = vmatpush1.bf16.msra.mxu0 0
        %563 = vmatprep.subr.bf16.mxu0 0
        %564 = vmatpush1.bf16.msra.mxu0 0
        %565 = vmatprep.subr.bf16.mxu0 0
        %566 = vmatpush1.bf16.msra.mxu0 0
        %567 = vmatprep.subr.bf16.mxu0 0
        %568 = vmatpush1.bf16.msra.mxu0 0
        %569 = vmatprep.subr.bf16.mxu0 0
        %570 = vmatpush1.bf16.msra.mxu0 0
        %571 = vmatprep.subr.bf16.mxu0 0
        %572 = vmatpush1.bf16.msra.mxu0 0
        %573 = vmatprep.subr.bf16.mxu0 0
        %574 = vmatpush1.bf16.msra.mxu0 0
        %575 = vmatprep.subr.bf16.mxu0 0
        %576 = vmatpush1.bf16.msra.mxu0 0
        %577 = vmatprep.subr.bf16.mxu0 0
        %578 = vmatpush1.bf16.msra.mxu0 0
        %579 = vmatprep.subr.bf16.mxu0 0
        %580 = vmatpush1.bf16.msra.mxu0 0
        %581 = vmatprep.mubr.bf16.mxu0 0
        %582 = vmatmul.mubr.bf16.gmra.mrb[0].mxu0 %v547
        %v583 = vpop.f32.mrb[0].mxu0
        %v584 = vadd.f32 %v428, %v583
        %v585 = vpop.f32.mrb[0].mxu0
        %v586 = vadd.f32 %v432, %v585
        %v587 = vpop.f32.mrb[0].mxu0
        %v588 = vpop.f32.mrb[0].mxu0
        %589 = vdwg.mxu0
        %590 = vmatprep.subr.bf16.mxu0 %v516
        %591 = vmatpush1.bf16.msra.mxu0 %v515
        %592 = vmatprep.subr.bf16.mxu0 %v524
        %593 = vmatpush1.bf16.msra.mxu0 %v523
        %594 = vmatprep.subr.bf16.mxu0 0
        %595 = vmatpush1.bf16.msra.mxu0 0
        %596 = vmatprep.subr.bf16.mxu0 0
        %597 = vmatpush1.bf16.msra.mxu0 0
        %598 = vmatprep.subr.bf16.mxu0 0
        %599 = vmatpush1.bf16.msra.mxu0 0
        %600 = vmatprep.subr.bf16.mxu0 0
        %601 = vmatpush1.bf16.msra.mxu0 0
        %602 = vmatprep.subr.bf16.mxu0 0
        %603 = vmatpush1.bf16.msra.mxu0 0
        %604 = vmatprep.subr.bf16.mxu0 0
        %605 = vmatpush1.bf16.msra.mxu0 0
        %606 = vmatprep.subr.bf16.mxu0 0
        %607 = vmatpush1.bf16.msra.mxu0 0
        %608 = vmatprep.subr.bf16.mxu0 0
        %609 = vmatpush1.bf16.msra.mxu0 0
        %610 = vmatprep.subr.bf16.mxu0 0
        %611 = vmatpush1.bf16.msra.mxu0 0
        %612 = vmatprep.subr.bf16.mxu0 0
        %613 = vmatpush1.bf16.msra.mxu0 0
        %614 = vmatprep.subr.bf16.mxu0 0
        %615 = vmatpush1.bf16.msra.mxu0 0
        %616 = vmatprep.subr.bf16.mxu0 0
        %617 = vmatpush1.bf16.msra.mxu0 0
        %618 = vmatprep.subr.bf16.mxu0 0
        %619 = vmatpush1.bf16.msra.mxu0 0
        %620 = vmatprep.subr.bf16.mxu0 0
        %621 = vmatpush1.bf16.msra.mxu0 0
        %622 = vmatprep.mubr.bf16.mxu0 0
        %623 = vmatmul.mubr.bf16.gmra.mrb[0].mxu0 %v547
        %v624 = vpop.f32.mrb[0].mxu0
        %v625 = vadd.f32 %v436, %v624
        %v626 = vpop.f32.mrb[0].mxu0
        %v627 = vadd.f32 %v440, %v626
        %v628 = vpop.f32.mrb[0].mxu0
        %v629 = vpop.f32.mrb[0].mxu0
        %630 = vdwg.mxu0
        %631 = vmatprep.subr.bf16.mxu0 %v518
        %632 = vmatpush1.bf16.msra.mxu0 %v517
        %633 = vmatprep.subr.bf16.mxu0 %v526
        %634 = vmatpush1.bf16.msra.mxu0 %v525
        %635 = vmatprep.subr.bf16.mxu0 0
        %636 = vmatpush1.bf16.msra.mxu0 0
        %637 = vmatprep.subr.bf16.mxu0 0
        %638 = vmatpush1.bf16.msra.mxu0 0
        %639 = vmatprep.subr.bf16.mxu0 0
        %640 = vmatpush1.bf16.msra.mxu0 0
        %641 = vmatprep.subr.bf16.mxu0 0
        %642 = vmatpush1.bf16.msra.mxu0 0
        %643 = vmatprep.subr.bf16.mxu0 0
        %644 = vmatpush1.bf16.msra.mxu0 0
        %645 = vmatprep.subr.bf16.mxu0 0
        %646 = vmatpush1.bf16.msra.mxu0 0
        %647 = vmatprep.subr.bf16.mxu0 0
        %648 = vmatpush1.bf16.msra.mxu0 0
        %649 = vmatprep.subr.bf16.mxu0 0
        %650 = vmatpush1.bf16.msra.mxu0 0
        %651 = vmatprep.subr.bf16.mxu0 0
        %652 = vmatpush1.bf16.msra.mxu0 0
        %653 = vmatprep.subr.bf16.mxu0 0
        %654 = vmatpush1.bf16.msra.mxu0 0
        %655 = vmatprep.subr.bf16.mxu0 0
        %656 = vmatpush1.bf16.msra.mxu0 0
        %657 = vmatprep.subr.bf16.mxu0 0
        %658 = vmatpush1.bf16.msra.mxu0 0
        %659 = vmatprep.subr.bf16.mxu0 0
        %660 = vmatpush1.bf16.msra.mxu0 0
        %661 = vmatprep.subr.bf16.mxu0 0
        %662 = vmatpush1.bf16.msra.mxu0 0
        %663 = vmatprep.mubr.bf16.mxu0 0
        %664 = vmatmul.mubr.bf16.gmra.mrb[0].mxu0 %v547
        %v665 = vpop.f32.mrb[0].mxu0
        %v666 = vadd.f32 %v444, %v665
        %v667 = vpop.f32.mrb[0].mxu0
        %v668 = vadd.f32 %v448, %v667
        %v669 = vpop.f32.mrb[0].mxu0
        %v670 = vpop.f32.mrb[0].mxu0
        %671 = vdwg.mxu0
        %672 = vmatprep.subr.bf16.mxu0 %v520
        %673 = vmatpush1.bf16.msra.mxu0 %v519
        %674 = vmatprep.subr.bf16.mxu0 %v528
        %675 = vmatpush1.bf16.msra.mxu0 %v527
        %676 = vmatprep.subr.bf16.mxu0 0
        %677 = vmatpush1.bf16.msra.mxu0 0
        %678 = vmatprep.subr.bf16.mxu0 0
        %679 = vmatpush1.bf16.msra.mxu0 0
        %680 = vmatprep.subr.bf16.mxu0 0
        %681 = vmatpush1.bf16.msra.mxu0 0
        %682 = vmatprep.subr.bf16.mxu0 0
        %683 = vmatpush1.bf16.msra.mxu0 0
        %684 = vmatprep.subr.bf16.mxu0 0
        %685 = vmatpush1.bf16.msra.mxu0 0
        %686 = vmatprep.subr.bf16.mxu0 0
        %687 = vmatpush1.bf16.msra.mxu0 0
        %688 = vmatprep.subr.bf16.mxu0 0
        %689 = vmatpush1.bf16.msra.mxu0 0
        %690 = vmatprep.subr.bf16.mxu0 0
        %691 = vmatpush1.bf16.msra.mxu0 0
        %692 = vmatprep.subr.bf16.mxu0 0
        %693 = vmatpush1.bf16.msra.mxu0 0
        %694 = vmatprep.subr.bf16.mxu0 0
        %695 = vmatpush1.bf16.msra.mxu0 0
        %696 = vmatprep.subr.bf16.mxu0 0
        %697 = vmatpush1.bf16.msra.mxu0 0
        %698 = vmatprep.subr.bf16.mxu0 0
        %699 = vmatpush1.bf16.msra.mxu0 0
        %700 = vmatprep.subr.bf16.mxu0 0
        %701 = vmatpush1.bf16.msra.mxu0 0
        %702 = vmatprep.subr.bf16.mxu0 0
        %703 = vmatpush1.bf16.msra.mxu0 0
        %704 = vmatprep.mubr.bf16.mxu0 0
        %705 = vmatmul.mubr.bf16.gmra.mrb[0].mxu0 %v547
        %v706 = vpop.f32.mrb[0].mxu0
        %v707 = vadd.f32 %v452, %v706
        %v708 = vpop.f32.mrb[0].mxu0
        %v709 = vadd.f32 %v456, %v708
        %v710 = vpop.f32.mrb[0].mxu0
        %v711 = vpop.f32.mrb[0].mxu0
        %712 = vdwg.mxu0
        %v713 = vld [vmem:[%s7] sm:$0xf]
        %v714 = vld [vmem:[%s7 + $0x4] sm:$0xf]
        %v715 = vld [vmem:[%s7 + $0x8] sm:$0xf]
        %v716 = vld [vmem:[%s7 + $0xc] sm:$0xf]
        %v721 = vunpack.c.l.b16 %v713
        %v722 = vunpack.c.l.b16 %v714
        %v723 = vunpack.c.l.b16 %v715
        %v724 = vunpack.c.l.b16 %v716
        %v725 = vpack.c.b16 %v722, %v721
        %v726 = vpack.c.b16 %v724, %v723
        %729 = vmatprep.subr.bf16.mxu0 0
        %730 = vmatpush1.bf16.msra.mxu0 %v725
        %731 = vmatprep.subr.bf16.mxu0 0
        %732 = vmatpush1.bf16.msra.mxu0 %v726
        %733 = vmatprep.subr.bf16.mxu0 0
        %734 = vmatpush1.bf16.msra.mxu0 0
        %735 = vmatprep.subr.bf16.mxu0 0
        %736 = vmatpush1.bf16.msra.mxu0 0
        %737 = vmatprep.subr.bf16.mxu0 0
        %738 = vmatpush1.bf16.msra.mxu0 0
        %739 = vmatprep.subr.bf16.mxu0 0
        %740 = vmatpush1.bf16.msra.mxu0 0
        %741 = vmatprep.subr.bf16.mxu0 0
        %742 = vmatpush1.bf16.msra.mxu0 0
        %743 = vmatprep.subr.bf16.mxu0 0
        %744 = vmatpush1.bf16.msra.mxu0 0
        %745 = vmatprep.subr.bf16.mxu0 0
        %746 = vmatpush1.bf16.msra.mxu0 0
        %747 = vmatprep.subr.bf16.mxu0 0
        %748 = vmatpush1.bf16.msra.mxu0 0
        %749 = vmatprep.subr.bf16.mxu0 0
        %750 = vmatpush1.bf16.msra.mxu0 0
        %751 = vmatprep.subr.bf16.mxu0 0
        %752 = vmatpush1.bf16.msra.mxu0 0
        %753 = vmatprep.subr.bf16.mxu0 0
        %754 = vmatpush1.bf16.msra.mxu0 0
        %755 = vmatprep.subr.bf16.mxu0 0
        %756 = vmatpush1.bf16.msra.mxu0 0
        %757 = vmatprep.subr.bf16.mxu0 0
        %758 = vmatpush1.bf16.msra.mxu0 0
        %759 = vmatprep.subr.bf16.mxu0 0
        %760 = vmatpush1.bf16.msra.mxu0 0
        %761 = vmatprep.mubr.bf16.mxu0 0
        %762 = vmatmul.mubr.bf16.gmra.mrb[0].mxu0 %v547
        %v763 = vpop.f32.mrb[0].mxu0
        %v764 = vadd.f32 0.0, %v763
        %v765 = vpop.f32.mrb[0].mxu0
        %v766 = vpop.f32.mrb[0].mxu0
        %v767 = vpop.f32.mrb[0].mxu0
        %768 = vdwg.mxu0
        %v769 = vld [vmem:[#allocation9] sm:$0xff]
        %v770 = vld [vmem:[#allocation2] sm:$0x1]
        %v771 = vld [vmem:[%s8] sm:$0x1]
        %v772 = vld [vmem:[%s404] sm:$0x1]
        %v773 = vpack.c.bf16 %v772, %v772
        %v774 = vld [vmem:[#allocation8] sm:$0xff]
        %v775 = vld [vmem:[#allocation8 + $0x8] sm:$0xff]
        %v776 = vld [vmem:[#allocation8 + $0x10] sm:$0xff]
        %v777 = vld [vmem:[#allocation8 + $0x18] sm:$0xff]
        %v778 = vld [vmem:[#allocation8 + $0x20] sm:$0xf]
        %v779 = vld [vmem:[#allocation8 + $0x24] sm:$0xff]
        %v780 = vld [vmem:[#allocation8 + $0x2c] sm:$0xff]
        %v781 = vld [vmem:[#allocation8 + $0x34] sm:$0xff]
        %v782 = vld [vmem:[#allocation8 + $0x3c] sm:$0xff]
        %v783 = vld [vmem:[#allocation8 + $0x44] sm:$0xf]
        %v784 = vld [vmem:[#allocation8 + $0x48] sm:$0xff]
        %v785 = vld [vmem:[#allocation8 + $0x50] sm:$0xff]
        %v786 = vld [vmem:[#allocation8 + $0x58] sm:$0xff]
        %v787 = vld [vmem:[#allocation8 + $0x60] sm:$0xff]
        %v788 = vld [vmem:[#allocation8 + $0x68] sm:$0xf]
        %v789 = vld [vmem:[#allocation8 + $0x6c] sm:$0xff]
        %v790 = vld [vmem:[#allocation8 + $0x74] sm:$0xff]
        %v791 = vld [vmem:[#allocation8 + $0x7c] sm:$0xff]
        %v792 = vld [vmem:[#allocation8 + $0x84] sm:$0xff]
        %v793 = vld [vmem:[#allocation8 + $0x8c] sm:$0xf]
        %v814 = vunpack.c.l.b16 %v774
        %v815 = vunpack.c.h.b16 %v774
        %v816 = vunpack.c.l.b16 %v775
        %v817 = vunpack.c.h.b16 %v775
        %v818 = vunpack.c.l.b16 %v776
        %v819 = vunpack.c.h.b16 %v776
        %v820 = vunpack.c.l.b16 %v777
        %v821 = vunpack.c.h.b16 %v777
        %v822 = vunpack.c.l.b16 %v778
        %v823 = vunpack.c.l.b16 %v779
        %v824 = vunpack.c.h.b16 %v779
        %v825 = vunpack.c.l.b16 %v780
        %v826 = vunpack.c.h.b16 %v780
        %v827 = vunpack.c.l.b16 %v781
        %v828 = vunpack.c.h.b16 %v781
        %v829 = vunpack.c.l.b16 %v782
        %v830 = vunpack.c.h.b16 %v782
        %v831 = vunpack.c.l.b16 %v783
        %v832 = vunpack.c.l.b16 %v784
        %v833 = vunpack.c.h.b16 %v784
        %v834 = vunpack.c.l.b16 %v785
        %v835 = vunpack.c.h.b16 %v785
        %v836 = vunpack.c.l.b16 %v786
        %v837 = vunpack.c.h.b16 %v786
        %v838 = vunpack.c.l.b16 %v787
        %v839 = vunpack.c.h.b16 %v787
        %v840 = vunpack.c.l.b16 %v788
        %v841 = vunpack.c.l.b16 %v789
        %v842 = vunpack.c.h.b16 %v789
        %v843 = vunpack.c.l.b16 %v790
        %v844 = vunpack.c.h.b16 %v790
        %v845 = vunpack.c.l.b16 %v791
        %v846 = vunpack.c.h.b16 %v791
        %v847 = vunpack.c.l.b16 %v792
        %v848 = vunpack.c.h.b16 %v792
        %v849 = vunpack.c.l.b16 %v793
        %v850 = vpack.c.b16 %v823, %v814
        %v851 = vpack.c.b16 %v824, %v815
        %v852 = vpack.c.b16 %v825, %v816
        %v853 = vpack.c.b16 %v826, %v817
        %v854 = vpack.c.b16 %v827, %v818
        %v855 = vpack.c.b16 %v828, %v819
        %v856 = vpack.c.b16 %v829, %v820
        %v857 = vpack.c.b16 %v830, %v821
        %v858 = vpack.c.b16 %v831, %v822
        %v859 = vpack.c.b16 %v841, %v832
        %v860 = vpack.c.b16 %v842, %v833
        %v861 = vpack.c.b16 %v843, %v834
        %v862 = vpack.c.b16 %v844, %v835
        %v863 = vpack.c.b16 %v845, %v836
        %v864 = vpack.c.b16 %v846, %v837
        %v865 = vpack.c.b16 %v847, %v838
        %v866 = vpack.c.b16 %v848, %v839
        %v867 = vpack.c.b16 %v849, %v840
        %v887 = vsel %vm545, %v773, 0
        %889 = vmatprep.subr.bf16.mxu0 %v851
        %890 = vmatpush1.bf16.msra.mxu0 %v850
        %891 = vmatprep.subr.bf16.mxu0 %v860
        %892 = vmatpush1.bf16.msra.mxu0 %v859
        %893 = vmatprep.subr.bf16.mxu0 0
        %894 = vmatpush1.bf16.msra.mxu0 0
        %895 = vmatprep.subr.bf16.mxu0 0
        %896 = vmatpush1.bf16.msra.mxu0 0
        %897 = vmatprep.subr.bf16.mxu0 0
        %898 = vmatpush1.bf16.msra.mxu0 0
        %899 = vmatprep.subr.bf16.mxu0 0
        %900 = vmatpush1.bf16.msra.mxu0 0
        %901 = vmatprep.subr.bf16.mxu0 0
        %902 = vmatpush1.bf16.msra.mxu0 0
        %903 = vmatprep.subr.bf16.mxu0 0
        %904 = vmatpush1.bf16.msra.mxu0 0
        %905 = vmatprep.subr.bf16.mxu0 0
        %906 = vmatpush1.bf16.msra.mxu0 0
        %907 = vmatprep.subr.bf16.mxu0 0
        %908 = vmatpush1.bf16.msra.mxu0 0
        %909 = vmatprep.subr.bf16.mxu0 0
        %910 = vmatpush1.bf16.msra.mxu0 0
        %911 = vmatprep.subr.bf16.mxu0 0
        %912 = vmatpush1.bf16.msra.mxu0 0
        %913 = vmatprep.subr.bf16.mxu0 0
        %914 = vmatpush1.bf16.msra.mxu0 0
        %915 = vmatprep.subr.bf16.mxu0 0
        %916 = vmatpush1.bf16.msra.mxu0 0
        %917 = vmatprep.subr.bf16.mxu0 0
        %918 = vmatpush1.bf16.msra.mxu0 0
        %919 = vmatprep.subr.bf16.mxu0 0
        %920 = vmatpush1.bf16.msra.mxu0 0
        %921 = vmatprep.mubr.bf16.mxu0 0
        %922 = vmatmul.mubr.bf16.gmra.mrb[0].mxu0 %v887
        %v923 = vpop.f32.mrb[0].mxu0
        %v924 = vadd.f32 0.0, %v923
        %v925 = vpop.f32.mrb[0].mxu0
        %v926 = vadd.f32 0.0, %v925
        %v927 = vpop.f32.mrb[0].mxu0
        %v928 = vpop.f32.mrb[0].mxu0
        %929 = vdwg.mxu0
        %930 = vmatprep.subr.bf16.mxu0 %v853
        %931 = vmatpush1.bf16.msra.mxu0 %v852
        %932 = vmatprep.subr.bf16.mxu0 %v862
        %933 = vmatpush1.bf16.msra.mxu0 %v861
        %934 = vmatprep.subr.bf16.mxu0 0
        %935 = vmatpush1.bf16.msra.mxu0 0
        %936 = vmatprep.subr.bf16.mxu0 0
        %937 = vmatpush1.bf16.msra.mxu0 0
        %938 = vmatprep.subr.bf16.mxu0 0
        %939 = vmatpush1.bf16.msra.mxu0 0
        %940 = vmatprep.subr.bf16.mxu0 0
        %941 = vmatpush1.bf16.msra.mxu0 0
        %942 = vmatprep.subr.bf16.mxu0 0
        %943 = vmatpush1.bf16.msra.mxu0 0
        %944 = vmatprep.subr.bf16.mxu0 0
        %945 = vmatpush1.bf16.msra.mxu0 0
        %946 = vmatprep.subr.bf16.mxu0 0
        %947 = vmatpush1.bf16.msra.mxu0 0
        %948 = vmatprep.subr.bf16.mxu0 0
        %949 = vmatpush1.bf16.msra.mxu0 0
        %950 = vmatprep.subr.bf16.mxu0 0
        %951 = vmatpush1.bf16.msra.mxu0 0
        %952 = vmatprep.subr.bf16.mxu0 0
        %953 = vmatpush1.bf16.msra.mxu0 0
        %954 = vmatprep.subr.bf16.mxu0 0
        %955 = vmatpush1.bf16.msra.mxu0 0
        %956 = vmatprep.subr.bf16.mxu0 0
        %957 = vmatpush1.bf16.msra.mxu0 0
        %958 = vmatprep.subr.bf16.mxu0 0
        %959 = vmatpush1.bf16.msra.mxu0 0
        %960 = vmatprep.subr.bf16.mxu0 0
        %961 = vmatpush1.bf16.msra.mxu0 0
        %962 = vmatprep.mubr.bf16.mxu0 0
        %963 = vmatmul.mubr.bf16.gmra.mrb[0].mxu0 %v887
        %v964 = vpop.f32.mrb[0].mxu0
        %v965 = vadd.f32 0.0, %v964
        %v966 = vpop.f32.mrb[0].mxu0
        %v967 = vadd.f32 0.0, %v966
        %v968 = vpop.f32.mrb[0].mxu0
        %v969 = vpop.f32.mrb[0].mxu0
        %970 = vdwg.mxu0
        %971 = vmatprep.subr.bf16.mxu0 %v855
        %972 = vmatpush1.bf16.msra.mxu0 %v854
        %973 = vmatprep.subr.bf16.mxu0 %v864
        %974 = vmatpush1.bf16.msra.mxu0 %v863
        %975 = vmatprep.subr.bf16.mxu0 0
        %976 = vmatpush1.bf16.msra.mxu0 0
        %977 = vmatprep.subr.bf16.mxu0 0
        %978 = vmatpush1.bf16.msra.mxu0 0
        %979 = vmatprep.subr.bf16.mxu0 0
        %980 = vmatpush1.bf16.msra.mxu0 0
        %981 = vmatprep.subr.bf16.mxu0 0
        %982 = vmatpush1.bf16.msra.mxu0 0
        %983 = vmatprep.subr.bf16.mxu0 0
        %984 = vmatpush1.bf16.msra.mxu0 0
        %985 = vmatprep.subr.bf16.mxu0 0
        %986 = vmatpush1.bf16.msra.mxu0 0
        %987 = vmatprep.subr.bf16.mxu0 0
        %988 = vmatpush1.bf16.msra.mxu0 0
        %989 = vmatprep.subr.bf16.mxu0 0
        %990 = vmatpush1.bf16.msra.mxu0 0
        %991 = vmatprep.subr.bf16.mxu0 0
        %992 = vmatpush1.bf16.msra.mxu0 0
        %993 = vmatprep.subr.bf16.mxu0 0
        %994 = vmatpush1.bf16.msra.mxu0 0
        %995 = vmatprep.subr.bf16.mxu0 0
        %996 = vmatpush1.bf16.msra.mxu0 0
        %997 = vmatprep.subr.bf16.mxu0 0
        %998 = vmatpush1.bf16.msra.mxu0 0
        %999 = vmatprep.subr.bf16.mxu0 0
        %1000 = vmatpush1.bf16.msra.mxu0 0
        %1001 = vmatprep.subr.bf16.mxu0 0
        %1002 = vmatpush1.bf16.msra.mxu0 0
        %1003 = vmatprep.mubr.bf16.mxu0 0
        %1004 = vmatmul.mubr.bf16.gmra.mrb[0].mxu0 %v887
        %v1005 = vpop.f32.mrb[0].mxu0
        %v1006 = vadd.f32 0.0, %v1005
        %v1007 = vpop.f32.mrb[0].mxu0
        %v1008 = vadd.f32 0.0, %v1007
        %v1009 = vpop.f32.mrb[0].mxu0
        %v1010 = vpop.f32.mrb[0].mxu0
        %1011 = vdwg.mxu0
        %1012 = vmatprep.subr.bf16.mxu0 %v857
        %1013 = vmatpush1.bf16.msra.mxu0 %v856
        %1014 = vmatprep.subr.bf16.mxu0 %v866
        %1015 = vmatpush1.bf16.msra.mxu0 %v865
        %1016 = vmatprep.subr.bf16.mxu0 0
        %1017 = vmatpush1.bf16.msra.mxu0 0
        %1018 = vmatprep.subr.bf16.mxu0 0
        %1019 = vmatpush1.bf16.msra.mxu0 0
        %1020 = vmatprep.subr.bf16.mxu0 0
        %1021 = vmatpush1.bf16.msra.mxu0 0
        %1022 = vmatprep.subr.bf16.mxu0 0
        %1023 = vmatpush1.bf16.msra.mxu0 0
        %1024 = vmatprep.subr.bf16.mxu0 0
        %1025 = vmatpush1.bf16.msra.mxu0 0
        %1026 = vmatprep.subr.bf16.mxu0 0
        %1027 = vmatpush1.bf16.msra.mxu0 0
        %1028 = vmatprep.subr.bf16.mxu0 0
        %1029 = vmatpush1.bf16.msra.mxu0 0
        %1030 = vmatprep.subr.bf16.mxu0 0
        %1031 = vmatpush1.bf16.msra.mxu0 0
        %1032 = vmatprep.subr.bf16.mxu0 0
        %1033 = vmatpush1.bf16.msra.mxu0 0
        %1034 = vmatprep.subr.bf16.mxu0 0
        %1035 = vmatpush1.bf16.msra.mxu0 0
        %1036 = vmatprep.subr.bf16.mxu0 0
        %1037 = vmatpush1.bf16.msra.mxu0 0
        %1038 = vmatprep.subr.bf16.mxu0 0
        %1039 = vmatpush1.bf16.msra.mxu0 0
        %1040 = vmatprep.subr.bf16.mxu0 0
        %1041 = vmatpush1.bf16.msra.mxu0 0
        %1042 = vmatprep.subr.bf16.mxu0 0
        %1043 = vmatpush1.bf16.msra.mxu0 0
        %1044 = vmatprep.mubr.bf16.mxu0 0
        %1045 = vmatmul.mubr.bf16.gmra.mrb[0].mxu0 %v887
        %v1046 = vpop.f32.mrb[0].mxu0
        %v1047 = vadd.f32 0.0, %v1046
        %v1048 = vpop.f32.mrb[0].mxu0
        %v1049 = vadd.f32 0.0, %v1048
        %v1050 = vpop.f32.mrb[0].mxu0
        %v1051 = vpop.f32.mrb[0].mxu0
        %1052 = vdwg.mxu0
        %1053 = vmatprep.subr.bf16.mxu0 0
        %1054 = vmatpush1.bf16.msra.mxu0 %v858
        %1055 = vmatprep.subr.bf16.mxu0 0
        %1056 = vmatpush1.bf16.msra.mxu0 %v867
        %1057 = vmatprep.subr.bf16.mxu0 0
        %1058 = vmatpush1.bf16.msra.mxu0 0
        %1059 = vmatprep.subr.bf16.mxu0 0
        %1060 = vmatpush1.bf16.msra.mxu0 0
        %1061 = vmatprep.subr.bf16.mxu0 0
        %1062 = vmatpush1.bf16.msra.mxu0 0
        %1063 = vmatprep.subr.bf16.mxu0 0
        %1064 = vmatpush1.bf16.msra.mxu0 0
        %1065 = vmatprep.subr.bf16.mxu0 0
        %1066 = vmatpush1.bf16.msra.mxu0 0
        %1067 = vmatprep.subr.bf16.mxu0 0
        %1068 = vmatpush1.bf16.msra.mxu0 0
        %1069 = vmatprep.subr.bf16.mxu0 0
        %1070 = vmatpush1.bf16.msra.mxu0 0
        %1071 = vmatprep.subr.bf16.mxu0 0
        %1072 = vmatpush1.bf16.msra.mxu0 0
        %1073 = vmatprep.subr.bf16.mxu0 0
        %1074 = vmatpush1.bf16.msra.mxu0 0
        %1075 = vmatprep.subr.bf16.mxu0 0
        %1076 = vmatpush1.bf16.msra.mxu0 0
        %1077 = vmatprep.subr.bf16.mxu0 0
        %1078 = vmatpush1.bf16.msra.mxu0 0
        %1079 = vmatprep.subr.bf16.mxu0 0
        %1080 = vmatpush1.bf16.msra.mxu0 0
        %1081 = vmatprep.subr.bf16.mxu0 0
        %1082 = vmatpush1.bf16.msra.mxu0 0
        %1083 = vmatprep.subr.bf16.mxu0 0
        %1084 = vmatpush1.bf16.msra.mxu0 0
        %1085 = vmatprep.mubr.bf16.mxu0 0
        %1086 = vmatmul.mubr.bf16.gmra.mrb[0].mxu0 %v887
        %v1087 = vpop.f32.mrb[0].mxu0
        %v1088 = vadd.f32 0.0, %v1087
        %v1089 = vpop.f32.mrb[0].mxu0
        %v1090 = vpop.f32.mrb[0].mxu0
        %v1091 = vpop.f32.mrb[0].mxu0
        %1092 = vdwg.mxu0
        %v1093 = vlaneseq
        %v1094 = vshrl.u32 %v1093, 7
        %v1095 = vsub.s32 0, %v1094
        %v1096 = vrot.slane %v924, %v1095
        %v1097 = vlaneseq
        %v1098 = vshrl.u32 %v1097, 7
        %v1099 = vsub.s32 0, %v1098
        %v1100 = vrot.slane %v926, %v1099
        %v1101 = vlaneseq
        %v1102 = vshrl.u32 %v1101, 7
        %v1103 = vsub.s32 0, %v1102
        %v1104 = vrot.slane %v965, %v1103
        %v1105 = vlaneseq
        %v1106 = vshrl.u32 %v1105, 7
        %v1107 = vsub.s32 0, %v1106
        %v1108 = vrot.slane %v967, %v1107
        %v1109 = vlaneseq
        %v1110 = vshrl.u32 %v1109, 7
        %v1111 = vsub.s32 0, %v1110
        %v1112 = vrot.slane %v1006, %v1111
        %v1113 = vlaneseq
        %v1114 = vshrl.u32 %v1113, 7
        %v1115 = vsub.s32 0, %v1114
        %v1116 = vrot.slane %v1008, %v1115
        %v1117 = vlaneseq
        %v1118 = vshrl.u32 %v1117, 7
        %v1119 = vsub.s32 0, %v1118
        %v1120 = vrot.slane %v1047, %v1119
        %v1121 = vlaneseq
        %v1122 = vshrl.u32 %v1121, 7
        %v1123 = vsub.s32 0, %v1122
        %v1124 = vrot.slane %v1049, %v1123
        %v1125 = vadd.f32 %v584, %v1096
        %v1126 = vadd.f32 %v586, %v1100
        %v1127 = vadd.f32 %v625, %v1104
        %v1128 = vadd.f32 %v627, %v1108
        %v1129 = vadd.f32 %v666, %v1112
        %v1130 = vadd.f32 %v668, %v1116
        %v1131 = vadd.f32 %v707, %v1120
        %v1132 = vadd.f32 %v709, %v1124
        %v1133 = vtanh.pop %v1125
        %v1134 = vtanh.pop %v1126
        %v1135 = vtanh.pop %v1127
        %v1136 = vtanh.pop %v1128
        %v1137 = vtanh.pop %v1129
        %v1138 = vtanh.pop %v1130
        %v1139 = vtanh.pop %v1131
        %v1140 = vtanh.pop %v1132
        %v1142 = vlaneseq
        %v1143 = vshrl.u32 %v1142, 7
        %v1144 = vsub.s32 0, %v1143
        %v1145 = vrot.slane %v769, %v1144
        %v1146 = vlaneseq
        %v1147 = vshrl.u32 %v1146, 7
        %v1148 = vsub.s32 1, %v1147
        %v1149 = vrot.slane %v769, %v1148
        %v1150 = vlaneseq
        %v1151 = vshrl.u32 %v1150, 7
        %v1152 = vsub.s32 2, %v1151
        %v1153 = vrot.slane %v769, %v1152
        %v1154 = vlaneseq
        %v1155 = vshrl.u32 %v1154, 7
        %v1156 = vsub.s32 3, %v1155
        %v1157 = vrot.slane %v769, %v1156
        %v1158 = vlaneseq
        %v1159 = vshrl.u32 %v1158, 7
        %v1160 = vsub.s32 4, %v1159
        %v1161 = vrot.slane %v769, %v1160
        %v1162 = vlaneseq
        %v1163 = vshrl.u32 %v1162, 7
        %v1164 = vsub.s32 5, %v1163
        %v1165 = vrot.slane %v769, %v1164
        %v1166 = vlaneseq
        %v1167 = vshrl.u32 %v1166, 7
        %v1168 = vsub.s32 6, %v1167
        %v1169 = vrot.slane %v769, %v1168
        %v1170 = vlaneseq
        %v1171 = vshrl.u32 %v1170, 7
        %v1172 = vsub.s32 7, %v1171
        %v1173 = vrot.slane %v769, %v1172
        %v1182 = vmul.f32 %v1133, %v1145
        %v1183 = vmul.f32 %v1134, %v1149
        %v1184 = vmul.f32 %v1135, %v1153
        %v1185 = vmul.f32 %v1136, %v1157
        %v1186 = vmul.f32 %v1137, %v1161
        %v1187 = vmul.f32 %v1138, %v1165
        %v1188 = vmul.f32 %v1139, %v1169
        %v1189 = vmul.f32 %v1140, %v1173
        %v1190 = vadd.f32 %v1182, %v1183
        %v1191 = vadd.f32 %v1190, %v1184
        %v1192 = vadd.f32 %v1191, %v1185
        %v1193 = vadd.f32 %v1192, %v1186
        %v1194 = vadd.f32 %v1193, %v1187
        %v1195 = vadd.f32 %v1194, %v1188
        %v1196 = vadd.f32 %v1195, %v1189
        %1197 = vadd.xlane.f32.xlu0 %v1196
        %v1198 = vpop.xlane.xlu0 %1197
        %v1200 = vlaneseq
        %v1201 = vshrl.u32 %v1200, 7
        %v1202 = vsub.s32 0, %v1201
        %v1203 = vrot.slane %v770, %v1202
        %v1205 = vadd.f32 %v1198, %v1203
        %v1206 = vmax.f32 %v1205, 0.0
        %vm1207 = vcmask 7168
        %v1208 = vsel %vm1207, %v1206, -inf
        %v1209 = vrot.slane %v1208, 4
        %v1210 = vmax.f32 %v1208, %v1209
        %v1211 = vrot.slane %v1210, 2
        %v1212 = vmax.f32 %v1210, %v1211
        %v1213 = vrot.slane %v1212, 1
        %v1214 = vmax.f32 %v1212, %v1213
        %v1215 = vsub.f32 %v1206, %v1214
        %v1216 = vmul.f32 %v1215, 1.442695
        %v1217 = vpow.pop %v1216
        %v1218 = vsel %vm1207, %v1217, 0.0
        %v1219 = vrot.slane %v1218, 4
        %v1220 = vadd.f32 %v1218, %v1219
        %v1221 = vrot.slane %v1220, 2
        %v1222 = vadd.f32 %v1220, %v1221
        %v1223 = vrot.slane %v1222, 1
        %v1224 = vadd.f32 %v1222, %v1223
        %v1225 = vrcp.pop %v1224
        %v1226 = vmul.f32 %v1217, %v1225
        %1228 = vset.pattern.permute.xlu0 0
        %1229 = vperm.xlu0 %1228, %v1226
        %v1230 = vpop.permute.xlu0 %1229
        %v1232 = vmul.f32 %v1230, %v764
        %v1233 = vrot.slane %v1232, 4
        %v1234 = vadd.f32 %v1232, %v1233
        %v1235 = vrot.slane %v1234, 2
        %v1236 = vadd.f32 %v1234, %v1235
        %v1237 = vrot.slane %v1236, 1
        %v1238 = vadd.f32 %v1236, %v1237
        %v1239 = vadd.f32 %v1088, %v1238
        %v1240 = vadd.f32 %v1239, %v771
        %v1241 = vtanh.pop %v1240
        %v1242 = vxor.u32 %v1240, 2147483648
        %v1243 = vmul.f32 %v1242, 1.442695
        %v1244 = vpow.pop %v1243
        %v1245 = vadd.f32 %v1244, 1.0
        %v1246 = vrcp.pop %v1245
        %v1247 = vmul.f32 1.0, %v1246
        %1249 = vrot.lane.b32.xlu0 %v1241, 32
        %v1250 = vpop.permute.xlu0 %1249
        %v1252 = vmul.f32 %v1247, %v1250
        %v1253 = vmul.f32 %v1247, 0.0
        %1255 = vrot.lane.b32.xlu0 %v1253, 96
        %v1256 = vpop.permute.xlu0 %1255
        %v1258 = vadd.f32 %v1252, %v1256
        %v1259 = vtanh.pop %v1258
        %1261 = vrot.lane.b32.xlu0 %v1259, 64
        %v1262 = vpop.permute.xlu0 %1261
        %v1264 = vmul.f32 %v1247, %v1262
        %v1265 = vpack.c.bf16 %v1264, %v1264
        %1267 = vrot.lane.b32.xlu0 %v1265, 32
        %v1268 = vpop.permute.xlu0 %1267
        %v1270 = vsel %vm545, %v1268, 0
        %1272 = vmatprep.subr.bf16.mxu0 %v851
        %1273 = vmatpush1.bf16.msra.mxu0 %v850
        %1274 = vmatprep.subr.bf16.mxu0 %v860
        %1275 = vmatpush1.bf16.msra.mxu0 %v859
        %1276 = vmatprep.subr.bf16.mxu0 0
        %1277 = vmatpush1.bf16.msra.mxu0 0
        %1278 = vmatprep.subr.bf16.mxu0 0
        %1279 = vmatpush1.bf16.msra.mxu0 0
        %1280 = vmatprep.subr.bf16.mxu0 0
        %1281 = vmatpush1.bf16.msra.mxu0 0
        %1282 = vmatprep.subr.bf16.mxu0 0
        %1283 = vmatpush1.bf16.msra.mxu0 0
        %1284 = vmatprep.subr.bf16.mxu0 0
        %1285 = vmatpush1.bf16.msra.mxu0 0
        %1286 = vmatprep.subr.bf16.mxu0 0
        %1287 = vmatpush1.bf16.msra.mxu0 0
        %1288 = vmatprep.subr.bf16.mxu0 0
        %1289 = vmatpush1.bf16.msra.mxu0 0
        %1290 = vmatprep.subr.bf16.mxu0 0
        %1291 = vmatpush1.bf16.msra.mxu0 0
        %1292 = vmatprep.subr.bf16.mxu0 0
        %1293 = vmatpush1.bf16.msra.mxu0 0
        %1294 = vmatprep.subr.bf16.mxu0 0
        %1295 = vmatpush1.bf16.msra.mxu0 0
        %1296 = vmatprep.subr.bf16.mxu0 0
        %1297 = vmatpush1.bf16.msra.mxu0 0
        %1298 = vmatprep.subr.bf16.mxu0 0
        %1299 = vmatpush1.bf16.msra.mxu0 0
        %1300 = vmatprep.subr.bf16.mxu0 0
        %1301 = vmatpush1.bf16.msra.mxu0 0
        %1302 = vmatprep.subr.bf16.mxu0 0
        %1303 = vmatpush1.bf16.msra.mxu0 0
        %1304 = vmatprep.mubr.bf16.mxu0 0
        %1305 = vmatmul.mubr.bf16.gmra.mrb[0].mxu0 %v1270
        %v1306 = vpop.f32.mrb[0].mxu0
        %v1307 = vadd.f32 0.0, %v1306
        %v1308 = vpop.f32.mrb[0].mxu0
        %v1309 = vadd.f32 0.0, %v1308
        %v1310 = vpop.f32.mrb[0].mxu0
        %v1311 = vpop.f32.mrb[0].mxu0
        %1312 = vdwg.mxu0
        %1313 = vmatprep.subr.bf16.mxu0 %v853
        %1314 = vmatpush1.bf16.msra.mxu0 %v852
        %1315 = vmatprep.subr.bf16.mxu0 %v862
        %1316 = vmatpush1.bf16.msra.mxu0 %v861
        %1317 = vmatprep.subr.bf16.mxu0 0
        %1318 = vmatpush1.bf16.msra.mxu0 0
        %1319 = vmatprep.subr.bf16.mxu0 0
        %1320 = vmatpush1.bf16.msra.mxu0 0
        %1321 = vmatprep.subr.bf16.mxu0 0
        %1322 = vmatpush1.bf16.msra.mxu0 0
        %1323 = vmatprep.subr.bf16.mxu0 0
        %1324 = vmatpush1.bf16.msra.mxu0 0
        %1325 = vmatprep.subr.bf16.mxu0 0
        %1326 = vmatpush1.bf16.msra.mxu0 0
        %1327 = vmatprep.subr.bf16.mxu0 0
        %1328 = vmatpush1.bf16.msra.mxu0 0
        %1329 = vmatprep.subr.bf16.mxu0 0
        %1330 = vmatpush1.bf16.msra.mxu0 0
        %1331 = vmatprep.subr.bf16.mxu0 0
        %1332 = vmatpush1.bf16.msra.mxu0 0
        %1333 = vmatprep.subr.bf16.mxu0 0
        %1334 = vmatpush1.bf16.msra.mxu0 0
        %1335 = vmatprep.subr.bf16.mxu0 0
        %1336 = vmatpush1.bf16.msra.mxu0 0
        %1337 = vmatprep.subr.bf16.mxu0 0
        %1338 = vmatpush1.bf16.msra.mxu0 0
        %1339 = vmatprep.subr.bf16.mxu0 0
        %1340 = vmatpush1.bf16.msra.mxu0 0
        %1341 = vmatprep.subr.bf16.mxu0 0
        %1342 = vmatpush1.bf16.msra.mxu0 0
        %1343 = vmatprep.subr.bf16.mxu0 0
        %1344 = vmatpush1.bf16.msra.mxu0 0
        %1345 = vmatprep.mubr.bf16.mxu0 0
        %1346 = vmatmul.mubr.bf16.gmra.mrb[0].mxu0 %v1270
        %v1347 = vpop.f32.mrb[0].mxu0
        %v1348 = vadd.f32 0.0, %v1347
        %v1349 = vpop.f32.mrb[0].mxu0
        %v1350 = vadd.f32 0.0, %v1349
        %v1351 = vpop.f32.mrb[0].mxu0
        %v1352 = vpop.f32.mrb[0].mxu0
        %1353 = vdwg.mxu0
        %1354 = vmatprep.subr.bf16.mxu0 %v855
        %1355 = vmatpush1.bf16.msra.mxu0 %v854
        %1356 = vmatprep.subr.bf16.mxu0 %v864
        %1357 = vmatpush1.bf16.msra.mxu0 %v863
        %1358 = vmatprep.subr.bf16.mxu0 0
        %1359 = vmatpush1.bf16.msra.mxu0 0
        %1360 = vmatprep.subr.bf16.mxu0 0
        %1361 = vmatpush1.bf16.msra.mxu0 0
        %1362 = vmatprep.subr.bf16.mxu0 0
        %1363 = vmatpush1.bf16.msra.mxu0 0
        %1364 = vmatprep.subr.bf16.mxu0 0
        %1365 = vmatpush1.bf16.msra.mxu0 0
        %1366 = vmatprep.subr.bf16.mxu0 0
        %1367 = vmatpush1.bf16.msra.mxu0 0
        %1368 = vmatprep.subr.bf16.mxu0 0
        %1369 = vmatpush1.bf16.msra.mxu0 0
        %1370 = vmatprep.subr.bf16.mxu0 0
        %1371 = vmatpush1.bf16.msra.mxu0 0
        %1372 = vmatprep.subr.bf16.mxu0 0
        %1373 = vmatpush1.bf16.msra.mxu0 0
        %1374 = vmatprep.subr.bf16.mxu0 0
        %1375 = vmatpush1.bf16.msra.mxu0 0
        %1376 = vmatprep.subr.bf16.mxu0 0
        %1377 = vmatpush1.bf16.msra.mxu0 0
        %1378 = vmatprep.subr.bf16.mxu0 0
        %1379 = vmatpush1.bf16.msra.mxu0 0
        %1380 = vmatprep.subr.bf16.mxu0 0
        %1381 = vmatpush1.bf16.msra.mxu0 0
        %1382 = vmatprep.subr.bf16.mxu0 0
        %1383 = vmatpush1.bf16.msra.mxu0 0
        %1384 = vmatprep.subr.bf16.mxu0 0
        %1385 = vmatpush1.bf16.msra.mxu0 0
        %1386 = vmatprep.mubr.bf16.mxu0 0
        %1387 = vmatmul.mubr.bf16.gmra.mrb[0].mxu0 %v1270
        %v1388 = vpop.f32.mrb[0].mxu0
        %v1389 = vadd.f32 0.0, %v1388
        %v1390 = vpop.f32.mrb[0].mxu0
        %v1391 = vadd.f32 0.0, %v1390
        %v1392 = vpop.f32.mrb[0].mxu0
        %v1393 = vpop.f32.mrb[0].mxu0
        %1394 = vdwg.mxu0
        %1395 = vmatprep.subr.bf16.mxu0 %v857
        %1396 = vmatpush1.bf16.msra.mxu0 %v856
        %1397 = vmatprep.subr.bf16.mxu0 %v866
        %1398 = vmatpush1.bf16.msra.mxu0 %v865
        %1399 = vmatprep.subr.bf16.mxu0 0
        %1400 = vmatpush1.bf16.msra.mxu0 0
        %1401 = vmatprep.subr.bf16.mxu0 0
        %1402 = vmatpush1.bf16.msra.mxu0 0
        %1403 = vmatprep.subr.bf16.mxu0 0
        %1404 = vmatpush1.bf16.msra.mxu0 0
        %1405 = vmatprep.subr.bf16.mxu0 0
        %1406 = vmatpush1.bf16.msra.mxu0 0
        %1407 = vmatprep.subr.bf16.mxu0 0
        %1408 = vmatpush1.bf16.msra.mxu0 0
        %1409 = vmatprep.subr.bf16.mxu0 0
        %1410 = vmatpush1.bf16.msra.mxu0 0
        %1411 = vmatprep.subr.bf16.mxu0 0
        %1412 = vmatpush1.bf16.msra.mxu0 0
        %1413 = vmatprep.subr.bf16.mxu0 0
        %1414 = vmatpush1.bf16.msra.mxu0 0
        %1415 = vmatprep.subr.bf16.mxu0 0
        %1416 = vmatpush1.bf16.msra.mxu0 0
        %1417 = vmatprep.subr.bf16.mxu0 0
        %1418 = vmatpush1.bf16.msra.mxu0 0
        %1419 = vmatprep.subr.bf16.mxu0 0
        %1420 = vmatpush1.bf16.msra.mxu0 0
        %1421 = vmatprep.subr.bf16.mxu0 0
        %1422 = vmatpush1.bf16.msra.mxu0 0
        %1423 = vmatprep.subr.bf16.mxu0 0
        %1424 = vmatpush1.bf16.msra.mxu0 0
        %1425 = vmatprep.subr.bf16.mxu0 0
        %1426 = vmatpush1.bf16.msra.mxu0 0
        %1427 = vmatprep.mubr.bf16.mxu0 0
        %1428 = vmatmul.mubr.bf16.gmra.mrb[0].mxu0 %v1270
        %v1429 = vpop.f32.mrb[0].mxu0
        %v1430 = vadd.f32 0.0, %v1429
        %v1431 = vpop.f32.mrb[0].mxu0
        %v1432 = vadd.f32 0.0, %v1431
        %v1433 = vpop.f32.mrb[0].mxu0
        %v1434 = vpop.f32.mrb[0].mxu0
        %1435 = vdwg.mxu0
        %1436 = vmatprep.subr.bf16.mxu0 0
        %1437 = vmatpush1.bf16.msra.mxu0 %v858
        %1438 = vmatprep.subr.bf16.mxu0 0
        %1439 = vmatpush1.bf16.msra.mxu0 %v867
        %1440 = vmatprep.subr.bf16.mxu0 0
        %1441 = vmatpush1.bf16.msra.mxu0 0
        %1442 = vmatprep.subr.bf16.mxu0 0
        %1443 = vmatpush1.bf16.msra.mxu0 0
        %1444 = vmatprep.subr.bf16.mxu0 0
        %1445 = vmatpush1.bf16.msra.mxu0 0
        %1446 = vmatprep.subr.bf16.mxu0 0
        %1447 = vmatpush1.bf16.msra.mxu0 0
        %1448 = vmatprep.subr.bf16.mxu0 0
        %1449 = vmatpush1.bf16.msra.mxu0 0
        %1450 = vmatprep.subr.bf16.mxu0 0
        %1451 = vmatpush1.bf16.msra.mxu0 0
        %1452 = vmatprep.subr.bf16.mxu0 0
        %1453 = vmatpush1.bf16.msra.mxu0 0
        %1454 = vmatprep.subr.bf16.mxu0 0
        %1455 = vmatpush1.bf16.msra.mxu0 0
        %1456 = vmatprep.subr.bf16.mxu0 0
        %1457 = vmatpush1.bf16.msra.mxu0 0
        %1458 = vmatprep.subr.bf16.mxu0 0
        %1459 = vmatpush1.bf16.msra.mxu0 0
        %1460 = vmatprep.subr.bf16.mxu0 0
        %1461 = vmatpush1.bf16.msra.mxu0 0
        %1462 = vmatprep.subr.bf16.mxu0 0
        %1463 = vmatpush1.bf16.msra.mxu0 0
        %1464 = vmatprep.subr.bf16.mxu0 0
        %1465 = vmatpush1.bf16.msra.mxu0 0
        %1466 = vmatprep.subr.bf16.mxu0 0
        %1467 = vmatpush1.bf16.msra.mxu0 0
        %1468 = vmatprep.mubr.bf16.mxu0 0
        %1469 = vmatmul.mubr.bf16.gmra.mrb[0].mxu0 %v1270
        %v1470 = vpop.f32.mrb[0].mxu0
        %v1471 = vadd.f32 0.0, %v1470
        %v1472 = vpop.f32.mrb[0].mxu0
        %v1473 = vpop.f32.mrb[0].mxu0
        %v1474 = vpop.f32.mrb[0].mxu0
        %1475 = vdwg.mxu0
        %v1476 = vlaneseq
        %v1477 = vshrl.u32 %v1476, 7
        %v1478 = vsub.s32 0, %v1477
        %v1479 = vrot.slane %v1307, %v1478
        %v1480 = vlaneseq
        %v1481 = vshrl.u32 %v1480, 7
        %v1482 = vsub.s32 0, %v1481
        %v1483 = vrot.slane %v1309, %v1482
        %v1484 = vlaneseq
        %v1485 = vshrl.u32 %v1484, 7
        %v1486 = vsub.s32 0, %v1485
        %v1487 = vrot.slane %v1348, %v1486
        %v1488 = vlaneseq
        %v1489 = vshrl.u32 %v1488, 7
        %v1490 = vsub.s32 0, %v1489
        %v1491 = vrot.slane %v1350, %v1490
        %v1492 = vlaneseq
        %v1493 = vshrl.u32 %v1492, 7
        %v1494 = vsub.s32 0, %v1493
        %v1495 = vrot.slane %v1389, %v1494
        %v1496 = vlaneseq
        %v1497 = vshrl.u32 %v1496, 7
        %v1498 = vsub.s32 0, %v1497
        %v1499 = vrot.slane %v1391, %v1498
        %v1500 = vlaneseq
        %v1501 = vshrl.u32 %v1500, 7
        %v1502 = vsub.s32 0, %v1501
        %v1503 = vrot.slane %v1430, %v1502
        %v1504 = vlaneseq
        %v1505 = vshrl.u32 %v1504, 7
        %v1506 = vsub.s32 0, %v1505
        %v1507 = vrot.slane %v1432, %v1506
        %v1508 = vadd.f32 %v584, %v1479
        %v1509 = vadd.f32 %v586, %v1483
        %v1510 = vadd.f32 %v625, %v1487
        %v1511 = vadd.f32 %v627, %v1491
        %v1512 = vadd.f32 %v666, %v1495
        %v1513 = vadd.f32 %v668, %v1499
        %v1514 = vadd.f32 %v707, %v1503
        %v1515 = vadd.f32 %v709, %v1507
        %v1516 = vtanh.pop %v1508
        %v1517 = vtanh.pop %v1509
        %v1518 = vtanh.pop %v1510
        %v1519 = vtanh.pop %v1511
        %v1520 = vtanh.pop %v1512
        %v1521 = vtanh.pop %v1513
        %v1522 = vtanh.pop %v1514
        %v1523 = vtanh.pop %v1515
        %v1524 = vmul.f32 %v1516, %v1145
        %v1525 = vmul.f32 %v1517, %v1149
        %v1526 = vmul.f32 %v1518, %v1153
        %v1527 = vmul.f32 %v1519, %v1157
        %v1528 = vmul.f32 %v1520, %v1161
        %v1529 = vmul.f32 %v1521, %v1165
        %v1530 = vmul.f32 %v1522, %v1169
        %v1531 = vmul.f32 %v1523, %v1173
        %v1532 = vadd.f32 %v1524, %v1525
        %v1533 = vadd.f32 %v1532, %v1526
        %v1534 = vadd.f32 %v1533, %v1527
        %v1535 = vadd.f32 %v1534, %v1528
        %v1536 = vadd.f32 %v1535, %v1529
        %v1537 = vadd.f32 %v1536, %v1530
        %v1538 = vadd.f32 %v1537, %v1531
        %1539 = vadd.xlane.f32.xlu0 %v1538
        %v1540 = vpop.xlane.xlu0 %1539
        %v1541 = vadd.f32 %v1540, %v1203
        %v1542 = vmax.f32 %v1541, 0.0
        %v1543 = vsel %vm1207, %v1542, -inf
        %v1544 = vrot.slane %v1543, 4
        %v1545 = vmax.f32 %v1543, %v1544
        %v1546 = vrot.slane %v1545, 2
        %v1547 = vmax.f32 %v1545, %v1546
        %v1548 = vrot.slane %v1547, 1
        %v1549 = vmax.f32 %v1547, %v1548
        %v1550 = vsub.f32 %v1542, %v1549
        %v1551 = vmul.f32 %v1550, 1.442695
        %v1552 = vpow.pop %v1551
        %v1553 = vsel %vm1207, %v1552, 0.0
        %v1554 = vrot.slane %v1553, 4
        %v1555 = vadd.f32 %v1553, %v1554
        %v1556 = vrot.slane %v1555, 2
        %v1557 = vadd.f32 %v1555, %v1556
        %v1558 = vrot.slane %v1557, 1
        %v1559 = vadd.f32 %v1557, %v1558
        %v1560 = vrcp.pop %v1559
        %v1561 = vmul.f32 %v1552, %v1560
        %1563 = vset.pattern.permute.xlu0 0
        %1564 = vperm.xlu0 %1563, %v1561
        %v1565 = vpop.permute.xlu0 %1564
        %v1567 = vmul.f32 %v1565, %v764
        %v1568 = vrot.slane %v1567, 4
        %v1569 = vadd.f32 %v1567, %v1568
        %v1570 = vrot.slane %v1569, 2
        %v1571 = vadd.f32 %v1569, %v1570
        %v1572 = vrot.slane %v1571, 1
        %v1573 = vadd.f32 %v1571, %v1572
        %v1574 = vadd.f32 %v1471, %v1573
        %v1575 = vadd.f32 %v1574, %v771
        %v1576 = vtanh.pop %v1575
        %v1577 = vxor.u32 %v1575, 2147483648
        %v1578 = vmul.f32 %v1577, 1.442695
        %v1579 = vpow.pop %v1578
        %v1580 = vadd.f32 %v1579, 1.0
        %v1581 = vrcp.pop %v1580
        %v1582 = vmul.f32 1.0, %v1581
        %1584 = vrot.lane.b32.xlu0 %v1576, 32
        %v1585 = vpop.permute.xlu0 %1584
        %v1587 = vmul.f32 %v1582, %v1585
        %1589 = vrot.lane.b32.xlu0 %v1258, 32
        %v1590 = vpop.permute.xlu0 %1589
        %v1592 = vmul.f32 %v1582, %v1590
        %1594 = vrot.lane.b32.xlu0 %v1592, 96
        %v1595 = vpop.permute.xlu0 %1594
        %v1597 = vadd.f32 %v1587, %v1595
        %v1598 = vtanh.pop %v1597
        %1600 = vrot.lane.b32.xlu0 %v1598, 64
        %v1601 = vpop.permute.xlu0 %1600
        %v1603 = vmul.f32 %v1582, %v1601
        %v1604 = vpack.c.bf16 %v1603, %v1603
        %1606 = vrot.lane.b32.xlu0 %v1604, 32
        %v1607 = vpop.permute.xlu0 %1606
        %v1609 = vsel %vm545, %v1607, 0
        %1611 = vmatprep.subr.bf16.mxu0 %v851
        %1612 = vmatpush1.bf16.msra.mxu0 %v850
        %1613 = vmatprep.subr.bf16.mxu0 %v860
        %1614 = vmatpush1.bf16.msra.mxu0 %v859
        %1615 = vmatprep.subr.bf16.mxu0 0
        %1616 = vmatpush1.bf16.msra.mxu0 0
        %1617 = vmatprep.subr.bf16.mxu0 0
        %1618 = vmatpush1.bf16.msra.mxu0 0
        %1619 = vmatprep.subr.bf16.mxu0 0
        %1620 = vmatpush1.bf16.msra.mxu0 0
        %1621 = vmatprep.subr.bf16.mxu0 0
        %1622 = vmatpush1.bf16.msra.mxu0 0
        %1623 = vmatprep.subr.bf16.mxu0 0
        %1624 = vmatpush1.bf16.msra.mxu0 0
        %1625 = vmatprep.subr.bf16.mxu0 0
        %1626 = vmatpush1.bf16.msra.mxu0 0
        %1627 = vmatprep.subr.bf16.mxu0 0
        %1628 = vmatpush1.bf16.msra.mxu0 0
        %1629 = vmatprep.subr.bf16.mxu0 0
        %1630 = vmatpush1.bf16.msra.mxu0 0
        %1631 = vmatprep.subr.bf16.mxu0 0
        %1632 = vmatpush1.bf16.msra.mxu0 0
        %1633 = vmatprep.subr.bf16.mxu0 0
        %1634 = vmatpush1.bf16.msra.mxu0 0
        %1635 = vmatprep.subr.bf16.mxu0 0
        %1636 = vmatpush1.bf16.msra.mxu0 0
        %1637 = vmatprep.subr.bf16.mxu0 0
        %1638 = vmatpush1.bf16.msra.mxu0 0
        %1639 = vmatprep.subr.bf16.mxu0 0
        %1640 = vmatpush1.bf16.msra.mxu0 0
        %1641 = vmatprep.subr.bf16.mxu0 0
        %1642 = vmatpush1.bf16.msra.mxu0 0
        %1643 = vmatprep.mubr.bf16.mxu0 0
        %1644 = vmatmul.mubr.bf16.gmra.mrb[0].mxu0 %v1609
        %v1645 = vpop.f32.mrb[0].mxu0
        %v1646 = vadd.f32 0.0, %v1645
        %v1647 = vpop.f32.mrb[0].mxu0
        %v1648 = vadd.f32 0.0, %v1647
        %v1649 = vpop.f32.mrb[0].mxu0
        %v1650 = vpop.f32.mrb[0].mxu0
        %1651 = vdwg.mxu0
        %1652 = vmatprep.subr.bf16.mxu0 %v853
        %1653 = vmatpush1.bf16.msra.mxu0 %v852
        %1654 = vmatprep.subr.bf16.mxu0 %v862
        %1655 = vmatpush1.bf16.msra.mxu0 %v861
        %1656 = vmatprep.subr.bf16.mxu0 0
        %1657 = vmatpush1.bf16.msra.mxu0 0
        %1658 = vmatprep.subr.bf16.mxu0 0
        %1659 = vmatpush1.bf16.msra.mxu0 0
        %1660 = vmatprep.subr.bf16.mxu0 0
        %1661 = vmatpush1.bf16.msra.mxu0 0
        %1662 = vmatprep.subr.bf16.mxu0 0
        %1663 = vmatpush1.bf16.msra.mxu0 0
        %1664 = vmatprep.subr.bf16.mxu0 0
        %1665 = vmatpush1.bf16.msra.mxu0 0
        %1666 = vmatprep.subr.bf16.mxu0 0
        %1667 = vmatpush1.bf16.msra.mxu0 0
        %1668 = vmatprep.subr.bf16.mxu0 0
        %1669 = vmatpush1.bf16.msra.mxu0 0
        %1670 = vmatprep.subr.bf16.mxu0 0
        %1671 = vmatpush1.bf16.msra.mxu0 0
        %1672 = vmatprep.subr.bf16.mxu0 0
        %1673 = vmatpush1.bf16.msra.mxu0 0
        %1674 = vmatprep.subr.bf16.mxu0 0
        %1675 = vmatpush1.bf16.msra.mxu0 0
        %1676 = vmatprep.subr.bf16.mxu0 0
        %1677 = vmatpush1.bf16.msra.mxu0 0
        %1678 = vmatprep.subr.bf16.mxu0 0
        %1679 = vmatpush1.bf16.msra.mxu0 0
        %1680 = vmatprep.subr.bf16.mxu0 0
        %1681 = vmatpush1.bf16.msra.mxu0 0
        %1682 = vmatprep.subr.bf16.mxu0 0
        %1683 = vmatpush1.bf16.msra.mxu0 0
        %1684 = vmatprep.mubr.bf16.mxu0 0
        %1685 = vmatmul.mubr.bf16.gmra.mrb[0].mxu0 %v1609
        %v1686 = vpop.f32.mrb[0].mxu0
        %v1687 = vadd.f32 0.0, %v1686
        %v1688 = vpop.f32.mrb[0].mxu0
        %v1689 = vadd.f32 0.0, %v1688
        %v1690 = vpop.f32.mrb[0].mxu0
        %v1691 = vpop.f32.mrb[0].mxu0
        %1692 = vdwg.mxu0
        %1693 = vmatprep.subr.bf16.mxu0 %v855
        %1694 = vmatpush1.bf16.msra.mxu0 %v854
        %1695 = vmatprep.subr.bf16.mxu0 %v864
        %1696 = vmatpush1.bf16.msra.mxu0 %v863
        %1697 = vmatprep.subr.bf16.mxu0 0
        %1698 = vmatpush1.bf16.msra.mxu0 0
        %1699 = vmatprep.subr.bf16.mxu0 0
        %1700 = vmatpush1.bf16.msra.mxu0 0
        %1701 = vmatprep.subr.bf16.mxu0 0
        %1702 = vmatpush1.bf16.msra.mxu0 0
        %1703 = vmatprep.subr.bf16.mxu0 0
        %1704 = vmatpush1.bf16.msra.mxu0 0
        %1705 = vmatprep.subr.bf16.mxu0 0
        %1706 = vmatpush1.bf16.msra.mxu0 0
        %1707 = vmatprep.subr.bf16.mxu0 0
        %1708 = vmatpush1.bf16.msra.mxu0 0
        %1709 = vmatprep.subr.bf16.mxu0 0
        %1710 = vmatpush1.bf16.msra.mxu0 0
        %1711 = vmatprep.subr.bf16.mxu0 0
        %1712 = vmatpush1.bf16.msra.mxu0 0
        %1713 = vmatprep.subr.bf16.mxu0 0
        %1714 = vmatpush1.bf16.msra.mxu0 0
        %1715 = vmatprep.subr.bf16.mxu0 0
        %1716 = vmatpush1.bf16.msra.mxu0 0
        %1717 = vmatprep.subr.bf16.mxu0 0
        %1718 = vmatpush1.bf16.msra.mxu0 0
        %1719 = vmatprep.subr.bf16.mxu0 0
        %1720 = vmatpush1.bf16.msra.mxu0 0
        %1721 = vmatprep.subr.bf16.mxu0 0
        %1722 = vmatpush1.bf16.msra.mxu0 0
        %1723 = vmatprep.subr.bf16.mxu0 0
        %1724 = vmatpush1.bf16.msra.mxu0 0
        %1725 = vmatprep.mubr.bf16.mxu0 0
        %1726 = vmatmul.mubr.bf16.gmra.mrb[0].mxu0 %v1609
        %v1727 = vpop.f32.mrb[0].mxu0
        %v1728 = vadd.f32 0.0, %v1727
        %v1729 = vpop.f32.mrb[0].mxu0
        %v1730 = vadd.f32 0.0, %v1729
        %v1731 = vpop.f32.mrb[0].mxu0
        %v1732 = vpop.f32.mrb[0].mxu0
        %1733 = vdwg.mxu0
        %1734 = vmatprep.subr.bf16.mxu0 %v857
        %1735 = vmatpush1.bf16.msra.mxu0 %v856
        %1736 = vmatprep.subr.bf16.mxu0 %v866
        %1737 = vmatpush1.bf16.msra.mxu0 %v865
        %1738 = vmatprep.subr.bf16.mxu0 0
        %1739 = vmatpush1.bf16.msra.mxu0 0
        %1740 = vmatprep.subr.bf16.mxu0 0
        %1741 = vmatpush1.bf16.msra.mxu0 0
        %1742 = vmatprep.subr.bf16.mxu0 0
        %1743 = vmatpush1.bf16.msra.mxu0 0
        %1744 = vmatprep.subr.bf16.mxu0 0
        %1745 = vmatpush1.bf16.msra.mxu0 0
        %1746 = vmatprep.subr.bf16.mxu0 0
        %1747 = vmatpush1.bf16.msra.mxu0 0
        %1748 = vmatprep.subr.bf16.mxu0 0
        %1749 = vmatpush1.bf16.msra.mxu0 0
        %1750 = vmatprep.subr.bf16.mxu0 0
        %1751 = vmatpush1.bf16.msra.mxu0 0
        %1752 = vmatprep.subr.bf16.mxu0 0
        %1753 = vmatpush1.bf16.msra.mxu0 0
        %1754 = vmatprep.subr.bf16.mxu0 0
        %1755 = vmatpush1.bf16.msra.mxu0 0
        %1756 = vmatprep.subr.bf16.mxu0 0
        %1757 = vmatpush1.bf16.msra.mxu0 0
        %1758 = vmatprep.subr.bf16.mxu0 0
        %1759 = vmatpush1.bf16.msra.mxu0 0
        %1760 = vmatprep.subr.bf16.mxu0 0
        %1761 = vmatpush1.bf16.msra.mxu0 0
        %1762 = vmatprep.subr.bf16.mxu0 0
        %1763 = vmatpush1.bf16.msra.mxu0 0
        %1764 = vmatprep.subr.bf16.mxu0 0
        %1765 = vmatpush1.bf16.msra.mxu0 0
        %1766 = vmatprep.mubr.bf16.mxu0 0
        %1767 = vmatmul.mubr.bf16.gmra.mrb[0].mxu0 %v1609
        %v1768 = vpop.f32.mrb[0].mxu0
        %v1769 = vadd.f32 0.0, %v1768
        %v1770 = vpop.f32.mrb[0].mxu0
        %v1771 = vadd.f32 0.0, %v1770
        %v1772 = vpop.f32.mrb[0].mxu0
        %v1773 = vpop.f32.mrb[0].mxu0
        %1774 = vdwg.mxu0
        %1775 = vmatprep.subr.bf16.mxu0 0
        %1776 = vmatpush1.bf16.msra.mxu0 %v858
        %1777 = vmatprep.subr.bf16.mxu0 0
        %1778 = vmatpush1.bf16.msra.mxu0 %v867
        %1779 = vmatprep.subr.bf16.mxu0 0
        %1780 = vmatpush1.bf16.msra.mxu0 0
        %1781 = vmatprep.subr.bf16.mxu0 0
        %1782 = vmatpush1.bf16.msra.mxu0 0
        %1783 = vmatprep.subr.bf16.mxu0 0
        %1784 = vmatpush1.bf16.msra.mxu0 0
        %1785 = vmatprep.subr.bf16.mxu0 0
        %1786 = vmatpush1.bf16.msra.mxu0 0
        %1787 = vmatprep.subr.bf16.mxu0 0
        %1788 = vmatpush1.bf16.msra.mxu0 0
        %1789 = vmatprep.subr.bf16.mxu0 0
        %1790 = vmatpush1.bf16.msra.mxu0 0
        %1791 = vmatprep.subr.bf16.mxu0 0
        %1792 = vmatpush1.bf16.msra.mxu0 0
        %1793 = vmatprep.subr.bf16.mxu0 0
        %1794 = vmatpush1.bf16.msra.mxu0 0
        %1795 = vmatprep.subr.bf16.mxu0 0
        %1796 = vmatpush1.bf16.msra.mxu0 0
        %1797 = vmatprep.subr.bf16.mxu0 0
        %1798 = vmatpush1.bf16.msra.mxu0 0
        %1799 = vmatprep.subr.bf16.mxu0 0
        %1800 = vmatpush1.bf16.msra.mxu0 0
        %1801 = vmatprep.subr.bf16.mxu0 0
        %1802 = vmatpush1.bf16.msra.mxu0 0
        %1803 = vmatprep.subr.bf16.mxu0 0
        %1804 = vmatpush1.bf16.msra.mxu0 0
        %1805 = vmatprep.subr.bf16.mxu0 0
        %1806 = vmatpush1.bf16.msra.mxu0 0
        %1807 = vmatprep.mubr.bf16.mxu0 0
        %1808 = vmatmul.mubr.bf16.gmra.mrb[0].mxu0 %v1609
        %v1809 = vpop.f32.mrb[0].mxu0
        %v1810 = vadd.f32 0.0, %v1809
        %v1811 = vpop.f32.mrb[0].mxu0
        %v1812 = vpop.f32.mrb[0].mxu0
        %v1813 = vpop.f32.mrb[0].mxu0
        %1814 = vdwg.mxu0
        %v1815 = vlaneseq
        %v1816 = vshrl.u32 %v1815, 7
        %v1817 = vsub.s32 0, %v1816
        %v1818 = vrot.slane %v1646, %v1817
        %v1819 = vlaneseq
        %v1820 = vshrl.u32 %v1819, 7
        %v1821 = vsub.s32 0, %v1820
        %v1822 = vrot.slane %v1648, %v1821
        %v1823 = vlaneseq
        %v1824 = vshrl.u32 %v1823, 7
        %v1825 = vsub.s32 0, %v1824
        %v1826 = vrot.slane %v1687, %v1825
        %v1827 = vlaneseq
        %v1828 = vshrl.u32 %v1827, 7
        %v1829 = vsub.s32 0, %v1828
        %v1830 = vrot.slane %v1689, %v1829
        %v1831 = vlaneseq
        %v1832 = vshrl.u32 %v1831, 7
        %v1833 = vsub.s32 0, %v1832
        %v1834 = vrot.slane %v1728, %v1833
        %v1835 = vlaneseq
        %v1836 = vshrl.u32 %v1835, 7
        %v1837 = vsub.s32 0, %v1836
        %v1838 = vrot.slane %v1730, %v1837
        %v1839 = vlaneseq
        %v1840 = vshrl.u32 %v1839, 7
        %v1841 = vsub.s32 0, %v1840
        %v1842 = vrot.slane %v1769, %v1841
        %v1843 = vlaneseq
        %v1844 = vshrl.u32 %v1843, 7
        %v1845 = vsub.s32 0, %v1844
        %v1846 = vrot.slane %v1771, %v1845
        %v1847 = vadd.f32 %v584, %v1818
        %v1848 = vadd.f32 %v586, %v1822
        %v1849 = vadd.f32 %v625, %v1826
        %v1850 = vadd.f32 %v627, %v1830
        %v1851 = vadd.f32 %v666, %v1834
        %v1852 = vadd.f32 %v668, %v1838
        %v1853 = vadd.f32 %v707, %v1842
        %v1854 = vadd.f32 %v709, %v1846
        %v1855 = vtanh.pop %v1847
        %v1856 = vtanh.pop %v1848
        %v1857 = vtanh.pop %v1849
        %v1858 = vtanh.pop %v1850
        %v1859 = vtanh.pop %v1851
        %v1860 = vtanh.pop %v1852
        %v1861 = vtanh.pop %v1853
        %v1862 = vtanh.pop %v1854
        %v1863 = vmul.f32 %v1855, %v1145
        %v1864 = vmul.f32 %v1856, %v1149
        %v1865 = vmul.f32 %v1857, %v1153
        %v1866 = vmul.f32 %v1858, %v1157
        %v1867 = vmul.f32 %v1859, %v1161
        %v1868 = vmul.f32 %v1860, %v1165
        %v1869 = vmul.f32 %v1861, %v1169
        %v1870 = vmul.f32 %v1862, %v1173
        %v1871 = vadd.f32 %v1863, %v1864
        %v1872 = vadd.f32 %v1871, %v1865
        %v1873 = vadd.f32 %v1872, %v1866
        %v1874 = vadd.f32 %v1873, %v1867
        %v1875 = vadd.f32 %v1874, %v1868
        %v1876 = vadd.f32 %v1875, %v1869
        %v1877 = vadd.f32 %v1876, %v1870
        %1878 = vadd.xlane.f32.xlu0 %v1877
        %v1879 = vpop.xlane.xlu0 %1878
        %v1880 = vadd.f32 %v1879, %v1203
        %v1881 = vmax.f32 %v1880, 0.0
        %v1882 = vsel %vm1207, %v1881, -inf
        %v1883 = vrot.slane %v1882, 4
        %v1884 = vmax.f32 %v1882, %v1883
        %v1885 = vrot.slane %v1884, 2
        %v1886 = vmax.f32 %v1884, %v1885
        %v1887 = vrot.slane %v1886, 1
        %v1888 = vmax.f32 %v1886, %v1887
        %v1889 = vsub.f32 %v1881, %v1888
        %v1890 = vmul.f32 %v1889, 1.442695
        %v1891 = vpow.pop %v1890
        %v1892 = vsel %vm1207, %v1891, 0.0
        %v1893 = vrot.slane %v1892, 4
        %v1894 = vadd.f32 %v1892, %v1893
        %v1895 = vrot.slane %v1894, 2
        %v1896 = vadd.f32 %v1894, %v1895
        %v1897 = vrot.slane %v1896, 1
        %v1898 = vadd.f32 %v1896, %v1897
        %v1899 = vrcp.pop %v1898
        %v1900 = vmul.f32 %v1891, %v1899
        %1902 = vset.pattern.permute.xlu0 0
        %1903 = vperm.xlu0 %1902, %v1900
        %v1904 = vpop.permute.xlu0 %1903
        %v1906 = vmul.f32 %v1904, %v764
        %v1907 = vrot.slane %v1906, 4
        %v1908 = vadd.f32 %v1906, %v1907
        %v1909 = vrot.slane %v1908, 2
        %v1910 = vadd.f32 %v1908, %v1909
        %v1911 = vrot.slane %v1910, 1
        %v1912 = vadd.f32 %v1910, %v1911
        %v1913 = vadd.f32 %v1810, %v1912
        %v1914 = vadd.f32 %v1913, %v771
        %v1915 = vtanh.pop %v1914
        %v1916 = vxor.u32 %v1914, 2147483648
        %v1917 = vmul.f32 %v1916, 1.442695
        %v1918 = vpow.pop %v1917
        %v1919 = vadd.f32 %v1918, 1.0
        %v1920 = vrcp.pop %v1919
        %v1921 = vmul.f32 1.0, %v1920
        %1923 = vrot.lane.b32.xlu0 %v1915, 32
        %v1924 = vpop.permute.xlu0 %1923
        %v1926 = vmul.f32 %v1921, %v1924
        %1928 = vrot.lane.b32.xlu0 %v1597, 32
        %v1929 = vpop.permute.xlu0 %1928
        %v1931 = vmul.f32 %v1921, %v1929
        %1933 = vrot.lane.b32.xlu0 %v1931, 96
        %v1934 = vpop.permute.xlu0 %1933
        %v1936 = vadd.f32 %v1926, %v1934
        %v1937 = vtanh.pop %v1936
        %1939 = vrot.lane.b32.xlu0 %v1937, 64
        %v1940 = vpop.permute.xlu0 %1939
        %v1942 = vmul.f32 %v1921, %v1940
        %v1943 = vpack.c.bf16 %v1942, %v1942
        %1945 = vrot.lane.b32.xlu0 %v1943, 32
        %v1946 = vpop.permute.xlu0 %1945
        %v1948 = vsel %vm545, %v1946, 0
        %1950 = vmatprep.subr.bf16.mxu0 %v851
        %1951 = vmatpush1.bf16.msra.mxu0 %v850
        %1952 = vmatprep.subr.bf16.mxu0 %v860
        %1953 = vmatpush1.bf16.msra.mxu0 %v859
        %1954 = vmatprep.subr.bf16.mxu0 0
        %1955 = vmatpush1.bf16.msra.mxu0 0
        %1956 = vmatprep.subr.bf16.mxu0 0
        %1957 = vmatpush1.bf16.msra.mxu0 0
        %1958 = vmatprep.subr.bf16.mxu0 0
        %1959 = vmatpush1.bf16.msra.mxu0 0
        %1960 = vmatprep.subr.bf16.mxu0 0
        %1961 = vmatpush1.bf16.msra.mxu0 0
        %1962 = vmatprep.subr.bf16.mxu0 0
        %1963 = vmatpush1.bf16.msra.mxu0 0
        %1964 = vmatprep.subr.bf16.mxu0 0
        %1965 = vmatpush1.bf16.msra.mxu0 0
        %1966 = vmatprep.subr.bf16.mxu0 0
        %1967 = vmatpush1.bf16.msra.mxu0 0
        %1968 = vmatprep.subr.bf16.mxu0 0
        %1969 = vmatpush1.bf16.msra.mxu0 0
        %1970 = vmatprep.subr.bf16.mxu0 0
        %1971 = vmatpush1.bf16.msra.mxu0 0
        %1972 = vmatprep.subr.bf16.mxu0 0
        %1973 = vmatpush1.bf16.msra.mxu0 0
        %1974 = vmatprep.subr.bf16.mxu0 0
        %1975 = vmatpush1.bf16.msra.mxu0 0
        %1976 = vmatprep.subr.bf16.mxu0 0
        %1977 = vmatpush1.bf16.msra.mxu0 0
        %1978 = vmatprep.subr.bf16.mxu0 0
        %1979 = vmatpush1.bf16.msra.mxu0 0
        %1980 = vmatprep.subr.bf16.mxu0 0
        %1981 = vmatpush1.bf16.msra.mxu0 0
        %1982 = vmatprep.mubr.bf16.mxu0 0
        %1983 = vmatmul.mubr.bf16.gmra.mrb[0].mxu0 %v1948
        %v1984 = vpop.f32.mrb[0].mxu0
        %v1985 = vadd.f32 0.0, %v1984
        %v1986 = vpop.f32.mrb[0].mxu0
        %v1987 = vadd.f32 0.0, %v1986
        %v1988 = vpop.f32.mrb[0].mxu0
        %v1989 = vpop.f32.mrb[0].mxu0
        %1990 = vdwg.mxu0
        %1991 = vmatprep.subr.bf16.mxu0 %v853
        %1992 = vmatpush1.bf16.msra.mxu0 %v852
        %1993 = vmatprep.subr.bf16.mxu0 %v862
        %1994 = vmatpush1.bf16.msra.mxu0 %v861
        %1995 = vmatprep.subr.bf16.mxu0 0
        %1996 = vmatpush1.bf16.msra.mxu0 0
        %1997 = vmatprep.subr.bf16.mxu0 0
        %1998 = vmatpush1.bf16.msra.mxu0 0
        %1999 = vmatprep.subr.bf16.mxu0 0
        %2000 = vmatpush1.bf16.msra.mxu0 0
        %2001 = vmatprep.subr.bf16.mxu0 0
        %2002 = vmatpush1.bf16.msra.mxu0 0
        %2003 = vmatprep.subr.bf16.mxu0 0
        %2004 = vmatpush1.bf16.msra.mxu0 0
        %2005 = vmatprep.subr.bf16.mxu0 0
        %2006 = vmatpush1.bf16.msra.mxu0 0
        %2007 = vmatprep.subr.bf16.mxu0 0
        %2008 = vmatpush1.bf16.msra.mxu0 0
        %2009 = vmatprep.subr.bf16.mxu0 0
        %2010 = vmatpush1.bf16.msra.mxu0 0
        %2011 = vmatprep.subr.bf16.mxu0 0
        %2012 = vmatpush1.bf16.msra.mxu0 0
        %2013 = vmatprep.subr.bf16.mxu0 0
        %2014 = vmatpush1.bf16.msra.mxu0 0
        %2015 = vmatprep.subr.bf16.mxu0 0
        %2016 = vmatpush1.bf16.msra.mxu0 0
        %2017 = vmatprep.subr.bf16.mxu0 0
        %2018 = vmatpush1.bf16.msra.mxu0 0
        %2019 = vmatprep.subr.bf16.mxu0 0
        %2020 = vmatpush1.bf16.msra.mxu0 0
        %2021 = vmatprep.subr.bf16.mxu0 0
        %2022 = vmatpush1.bf16.msra.mxu0 0
        %2023 = vmatprep.mubr.bf16.mxu0 0
        %2024 = vmatmul.mubr.bf16.gmra.mrb[0].mxu0 %v1948
        %v2025 = vpop.f32.mrb[0].mxu0
        %v2026 = vadd.f32 0.0, %v2025
        %v2027 = vpop.f32.mrb[0].mxu0
        %v2028 = vadd.f32 0.0, %v2027
        %v2029 = vpop.f32.mrb[0].mxu0
        %v2030 = vpop.f32.mrb[0].mxu0
        %2031 = vdwg.mxu0
        %2032 = vmatprep.subr.bf16.mxu0 %v855
        %2033 = vmatpush1.bf16.msra.mxu0 %v854
        %2034 = vmatprep.subr.bf16.mxu0 %v864
        %2035 = vmatpush1.bf16.msra.mxu0 %v863
        %2036 = vmatprep.subr.bf16.mxu0 0
        %2037 = vmatpush1.bf16.msra.mxu0 0
        %2038 = vmatprep.subr.bf16.mxu0 0
        %2039 = vmatpush1.bf16.msra.mxu0 0
        %2040 = vmatprep.subr.bf16.mxu0 0
        %2041 = vmatpush1.bf16.msra.mxu0 0
        %2042 = vmatprep.subr.bf16.mxu0 0
        %2043 = vmatpush1.bf16.msra.mxu0 0
        %2044 = vmatprep.subr.bf16.mxu0 0
        %2045 = vmatpush1.bf16.msra.mxu0 0
        %2046 = vmatprep.subr.bf16.mxu0 0
        %2047 = vmatpush1.bf16.msra.mxu0 0
        %2048 = vmatprep.subr.bf16.mxu0 0
        %2049 = vmatpush1.bf16.msra.mxu0 0
        %2050 = vmatprep.subr.bf16.mxu0 0
        %2051 = vmatpush1.bf16.msra.mxu0 0
        %2052 = vmatprep.subr.bf16.mxu0 0
        %2053 = vmatpush1.bf16.msra.mxu0 0
        %2054 = vmatprep.subr.bf16.mxu0 0
        %2055 = vmatpush1.bf16.msra.mxu0 0
        %2056 = vmatprep.subr.bf16.mxu0 0
        %2057 = vmatpush1.bf16.msra.mxu0 0
        %2058 = vmatprep.subr.bf16.mxu0 0
        %2059 = vmatpush1.bf16.msra.mxu0 0
        %2060 = vmatprep.subr.bf16.mxu0 0
        %2061 = vmatpush1.bf16.msra.mxu0 0
        %2062 = vmatprep.subr.bf16.mxu0 0
        %2063 = vmatpush1.bf16.msra.mxu0 0
        %2064 = vmatprep.mubr.bf16.mxu0 0
        %2065 = vmatmul.mubr.bf16.gmra.mrb[0].mxu0 %v1948
        %v2066 = vpop.f32.mrb[0].mxu0
        %v2067 = vadd.f32 0.0, %v2066
        %v2068 = vpop.f32.mrb[0].mxu0
        %v2069 = vadd.f32 0.0, %v2068
        %v2070 = vpop.f32.mrb[0].mxu0
        %v2071 = vpop.f32.mrb[0].mxu0
        %2072 = vdwg.mxu0
        %2073 = vmatprep.subr.bf16.mxu0 %v857
        %2074 = vmatpush1.bf16.msra.mxu0 %v856
        %2075 = vmatprep.subr.bf16.mxu0 %v866
        %2076 = vmatpush1.bf16.msra.mxu0 %v865
        %2077 = vmatprep.subr.bf16.mxu0 0
        %2078 = vmatpush1.bf16.msra.mxu0 0
        %2079 = vmatprep.subr.bf16.mxu0 0
        %2080 = vmatpush1.bf16.msra.mxu0 0
        %2081 = vmatprep.subr.bf16.mxu0 0
        %2082 = vmatpush1.bf16.msra.mxu0 0
        %2083 = vmatprep.subr.bf16.mxu0 0
        %2084 = vmatpush1.bf16.msra.mxu0 0
        %2085 = vmatprep.subr.bf16.mxu0 0
        %2086 = vmatpush1.bf16.msra.mxu0 0
        %2087 = vmatprep.subr.bf16.mxu0 0
        %2088 = vmatpush1.bf16.msra.mxu0 0
        %2089 = vmatprep.subr.bf16.mxu0 0
        %2090 = vmatpush1.bf16.msra.mxu0 0
        %2091 = vmatprep.subr.bf16.mxu0 0
        %2092 = vmatpush1.bf16.msra.mxu0 0
        %2093 = vmatprep.subr.bf16.mxu0 0
        %2094 = vmatpush1.bf16.msra.mxu0 0
        %2095 = vmatprep.subr.bf16.mxu0 0
        %2096 = vmatpush1.bf16.msra.mxu0 0
        %2097 = vmatprep.subr.bf16.mxu0 0
        %2098 = vmatpush1.bf16.msra.mxu0 0
        %2099 = vmatprep.subr.bf16.mxu0 0
        %2100 = vmatpush1.bf16.msra.mxu0 0
        %2101 = vmatprep.subr.bf16.mxu0 0
        %2102 = vmatpush1.bf16.msra.mxu0 0
        %2103 = vmatprep.subr.bf16.mxu0 0
        %2104 = vmatpush1.bf16.msra.mxu0 0
        %2105 = vmatprep.mubr.bf16.mxu0 0
        %2106 = vmatmul.mubr.bf16.gmra.mrb[0].mxu0 %v1948
        %v2107 = vpop.f32.mrb[0].mxu0
        %v2108 = vadd.f32 0.0, %v2107
        %v2109 = vpop.f32.mrb[0].mxu0
        %v2110 = vadd.f32 0.0, %v2109
        %v2111 = vpop.f32.mrb[0].mxu0
        %v2112 = vpop.f32.mrb[0].mxu0
        %2113 = vdwg.mxu0
        %2114 = vmatprep.subr.bf16.mxu0 0
        %2115 = vmatpush1.bf16.msra.mxu0 %v858
        %2116 = vmatprep.subr.bf16.mxu0 0
        %2117 = vmatpush1.bf16.msra.mxu0 %v867
        %2118 = vmatprep.subr.bf16.mxu0 0
        %2119 = vmatpush1.bf16.msra.mxu0 0
        %2120 = vmatprep.subr.bf16.mxu0 0
        %2121 = vmatpush1.bf16.msra.mxu0 0
        %2122 = vmatprep.subr.bf16.mxu0 0
        %2123 = vmatpush1.bf16.msra.mxu0 0
        %2124 = vmatprep.subr.bf16.mxu0 0
        %2125 = vmatpush1.bf16.msra.mxu0 0
        %2126 = vmatprep.subr.bf16.mxu0 0
        %2127 = vmatpush1.bf16.msra.mxu0 0
        %2128 = vmatprep.subr.bf16.mxu0 0
        %2129 = vmatpush1.bf16.msra.mxu0 0
        %2130 = vmatprep.subr.bf16.mxu0 0
        %2131 = vmatpush1.bf16.msra.mxu0 0
        %2132 = vmatprep.subr.bf16.mxu0 0
        %2133 = vmatpush1.bf16.msra.mxu0 0
        %2134 = vmatprep.subr.bf16.mxu0 0
        %2135 = vmatpush1.bf16.msra.mxu0 0
        %2136 = vmatprep.subr.bf16.mxu0 0
        %2137 = vmatpush1.bf16.msra.mxu0 0
        %2138 = vmatprep.subr.bf16.mxu0 0
        %2139 = vmatpush1.bf16.msra.mxu0 0
        %2140 = vmatprep.subr.bf16.mxu0 0
        %2141 = vmatpush1.bf16.msra.mxu0 0
        %2142 = vmatprep.subr.bf16.mxu0 0
        %2143 = vmatpush1.bf16.msra.mxu0 0
        %2144 = vmatprep.subr.bf16.mxu0 0
        %2145 = vmatpush1.bf16.msra.mxu0 0
        %2146 = vmatprep.mubr.bf16.mxu0 0
        %2147 = vmatmul.mubr.bf16.gmra.mrb[0].mxu0 %v1948
        %v2148 = vpop.f32.mrb[0].mxu0
        %v2149 = vadd.f32 0.0, %v2148
        %v2150 = vpop.f32.mrb[0].mxu0
        %v2151 = vpop.f32.mrb[0].mxu0
        %v2152 = vpop.f32.mrb[0].mxu0
        %2153 = vdwg.mxu0
        %v2154 = vlaneseq
        %v2155 = vshrl.u32 %v2154, 7
        %v2156 = vsub.s32 0, %v2155
        %v2157 = vrot.slane %v1985, %v2156
        %v2158 = vlaneseq
        %v2159 = vshrl.u32 %v2158, 7
        %v2160 = vsub.s32 0, %v2159
        %v2161 = vrot.slane %v1987, %v2160
        %v2162 = vlaneseq
        %v2163 = vshrl.u32 %v2162, 7
        %v2164 = vsub.s32 0, %v2163
        %v2165 = vrot.slane %v2026, %v2164
        %v2166 = vlaneseq
        %v2167 = vshrl.u32 %v2166, 7
        %v2168 = vsub.s32 0, %v2167
        %v2169 = vrot.slane %v2028, %v2168
        %v2170 = vlaneseq
        %v2171 = vshrl.u32 %v2170, 7
        %v2172 = vsub.s32 0, %v2171
        %v2173 = vrot.slane %v2067, %v2172
        %v2174 = vlaneseq
        %v2175 = vshrl.u32 %v2174, 7
        %v2176 = vsub.s32 0, %v2175
        %v2177 = vrot.slane %v2069, %v2176
        %v2178 = vlaneseq
        %v2179 = vshrl.u32 %v2178, 7
        %v2180 = vsub.s32 0, %v2179
        %v2181 = vrot.slane %v2108, %v2180
        %v2182 = vlaneseq
        %v2183 = vshrl.u32 %v2182, 7
        %v2184 = vsub.s32 0, %v2183
        %v2185 = vrot.slane %v2110, %v2184
        %v2186 = vadd.f32 %v584, %v2157
        %v2187 = vadd.f32 %v586, %v2161
        %v2188 = vadd.f32 %v625, %v2165
        %v2189 = vadd.f32 %v627, %v2169
        %v2190 = vadd.f32 %v666, %v2173
        %v2191 = vadd.f32 %v668, %v2177
        %v2192 = vadd.f32 %v707, %v2181
        %v2193 = vadd.f32 %v709, %v2185
        %v2194 = vtanh.pop %v2186
        %v2195 = vtanh.pop %v2187
        %v2196 = vtanh.pop %v2188
        %v2197 = vtanh.pop %v2189
        %v2198 = vtanh.pop %v2190
        %v2199 = vtanh.pop %v2191
        %v2200 = vtanh.pop %v2192
        %v2201 = vtanh.pop %v2193
        %v2202 = vmul.f32 %v2194, %v1145
        %v2203 = vmul.f32 %v2195, %v1149
        %v2204 = vmul.f32 %v2196, %v1153
        %v2205 = vmul.f32 %v2197, %v1157
        %v2206 = vmul.f32 %v2198, %v1161
        %v2207 = vmul.f32 %v2199, %v1165
        %v2208 = vmul.f32 %v2200, %v1169
        %v2209 = vmul.f32 %v2201, %v1173
        %v2210 = vadd.f32 %v2202, %v2203
        %v2211 = vadd.f32 %v2210, %v2204
        %v2212 = vadd.f32 %v2211, %v2205
        %v2213 = vadd.f32 %v2212, %v2206
        %v2214 = vadd.f32 %v2213, %v2207
        %v2215 = vadd.f32 %v2214, %v2208
        %v2216 = vadd.f32 %v2215, %v2209
        %2217 = vadd.xlane.f32.xlu0 %v2216
        %v2218 = vpop.xlane.xlu0 %2217
        %v2219 = vadd.f32 %v2218, %v1203
        %v2220 = vmax.f32 %v2219, 0.0
        %v2221 = vsel %vm1207, %v2220, -inf
        %v2222 = vrot.slane %v2221, 4
        %v2223 = vmax.f32 %v2221, %v2222
        %v2224 = vrot.slane %v2223, 2
        %v2225 = vmax.f32 %v2223, %v2224
        %v2226 = vrot.slane %v2225, 1
        %v2227 = vmax.f32 %v2225, %v2226
        %v2228 = vsub.f32 %v2220, %v2227
        %v2229 = vmul.f32 %v2228, 1.442695
        %v2230 = vpow.pop %v2229
        %v2231 = vsel %vm1207, %v2230, 0.0
        %v2232 = vrot.slane %v2231, 4
        %v2233 = vadd.f32 %v2231, %v2232
        %v2234 = vrot.slane %v2233, 2
        %v2235 = vadd.f32 %v2233, %v2234
        %v2236 = vrot.slane %v2235, 1
        %v2237 = vadd.f32 %v2235, %v2236
        %v2238 = vrcp.pop %v2237
        %v2239 = vmul.f32 %v2230, %v2238
        %2241 = vset.pattern.permute.xlu0 0
        %2242 = vperm.xlu0 %2241, %v2239
        %v2243 = vpop.permute.xlu0 %2242
        %v2245 = vmul.f32 %v2243, %v764
        %v2246 = vrot.slane %v2245, 4
        %v2247 = vadd.f32 %v2245, %v2246
        %v2248 = vrot.slane %v2247, 2
        %v2249 = vadd.f32 %v2247, %v2248
        %v2250 = vrot.slane %v2249, 1
        %v2251 = vadd.f32 %v2249, %v2250
        %v2252 = vadd.f32 %v2149, %v2251
        %v2253 = vadd.f32 %v2252, %v771
        %v2254 = vtanh.pop %v2253
        %v2255 = vxor.u32 %v2253, 2147483648
        %v2256 = vmul.f32 %v2255, 1.442695
        %v2257 = vpow.pop %v2256
        %v2258 = vadd.f32 %v2257, 1.0
        %v2259 = vrcp.pop %v2258
        %v2260 = vmul.f32 1.0, %v2259
        %2262 = vrot.lane.b32.xlu0 %v2254, 32
        %v2263 = vpop.permute.xlu0 %2262
        %v2265 = vmul.f32 %v2260, %v2263
        %2267 = vrot.lane.b32.xlu0 %v1936, 32
        %v2268 = vpop.permute.xlu0 %2267
        %v2270 = vmul.f32 %v2260, %v2268
        %2272 = vrot.lane.b32.xlu0 %v2270, 96
        %v2273 = vpop.permute.xlu0 %2272
        %v2275 = vadd.f32 %v2265, %v2273
        %v2276 = vtanh.pop %v2275
        %2278 = vrot.lane.b32.xlu0 %v2276, 64
        %v2279 = vpop.permute.xlu0 %2278
        %v2281 = vmul.f32 %v2260, %v2279
        %2283 = vrot.lane.b32.xlu0 %v1264, 32
        %v2284 = vpop.permute.xlu0 %2283
        %2287 = vrot.lane.b32.xlu0 %v1603, 64
        %v2288 = vpop.permute.xlu0 %2287
        %2291 = vrot.lane.b32.xlu0 %v1942, 96
        %v2292 = vpop.permute.xlu0 %2291
        %v2294 = vsel %vm545, %v2284, %v2288
        %vm2295 = vcmask 523264
        %v2296 = vsel %vm2295, %v2294, %v2292
        %vm2297 = vcmask 785408
        %v2298 = vsel %vm2297, %v2296, %v2281
        %2299 = vst [vmem:[%s401] sm:$0x1] %v2298
        %s2300 = sand.u32 %s237, 1
        %s2301 = scalar_lea.sflag [#allocation5], %s2300
        %s2302 = sand.u32 %s237, 1
        %s2303 = scalar_lea.vmem [#allocation11], %s2302
        // Predicated region
        $region73: #{tpu_custom_call.1} parent=55 // pred_check
          %p2304 = pneg %p247
        $region74: #{tpu_custom_call.1} parent=55 // pred_check_branch
          %2306 = sbr.rel (%p2304) target = $region76
        $region75: #{tpu_custom_call.1} parent=55 // pred_region
          %s2308 = ssub.s32 16, 16
          %2309 = vsyncadd %s2301, %s2308
          %s2310 = smul.addr %s30, 16
          %s2311 = scalar_lea.hbm %s9, %s2310
          %s2313 = sshll.u32 %s2303, 4
          %s2314 = int_to_ptr.vmem [resolvable:$true] %s2313
          %2316 = dma.vmem_to_hbm [thread:$0]  %s2314, 16, %s2311, %s2301
        $region76: #{tpu_custom_call.1} parent=55 // pred_fallthru
          _
      $region56: #{tpu_custom_call.1} parent=5 // pred_fallthru
        _
      %p2317 = scmp.le.s32.totalorder 2, %s25
      // Predicated region
      $region77: #{tpu_custom_call.1} parent=5 // pred_check
        %p2318 = pneg %p2317
      $region78: #{tpu_custom_call.1} parent=5 // pred_check_branch
        %2320 = sbr.rel (%p2318) target = $region80
      $region79: #{tpu_custom_call.1} parent=5 // pred_region
        %s2321 = ssub.s32 %s25, 2
        // Predicated region
        $region81: #{tpu_custom_call.1} parent=79 // pred_check
          %p2322 = pneg %p253
        $region82: #{tpu_custom_call.1} parent=79 // pred_check_branch
          %2324 = sbr.rel (%p2322) target = $region84
        $region83: #{tpu_custom_call.1} parent=79 // pred_region
          %s2325 = sand.u32 %s238, 1
          %s2326 = scalar_lea.sflag [#allocation5], %s2325
          %s2327 = sand.u32 %s238, 1
          %s2328 = scalar_lea.vmem [#allocation11], %s2327
          %2329 = dma.done %s2326, 16
        $region84: #{tpu_custom_call.1} parent=79 // pred_fallthru
          _
      $region80: #{tpu_custom_call.1} parent=5 // pred_fallthru
        _
    $region6: #{tpu_custom_call.1} parent=1 // loop_footer
      %s29 = sadd.s32 1, %s25
    $region7: #{tpu_custom_call.1} parent=1 // loop_footer_branch
      %24 = sbr.rel target = $region3
    $region8: #{tpu_custom_call.1} parent=1 // loop_exit
      _
    %2330 = vsyncpa [#allocation4], 1
    %s2331 = scalar_lea.sflag [#allocation4], 1
    %2332 = vsyncpa %s2331, 1
    %2333 = vsyncpa [#allocation7], 1
    %2334 = vsyncpa [#allocation10], 1
    %2335 = vsyncpa [#allocation5], 1
    %s2336 = scalar_lea.sflag [#allocation5], 1
    %2337 = vsyncpa %s2336, 1

</llo_original>
